<compile_context>
chip_gen: v5e
topology: v5e:2x2
jax: 0.10.0
libtpu: 0.0.40
codegen_flags: <defaults>
</compile_context>

<pallas_src>
import numpy as np

import jax
import jax.numpy as jnp
from jax.experimental import pallas as pl
from jax.experimental.pallas import tpu as pltpu


# Static geometry: a 1x38x38 input is the size consistent with fc1 = nn.Linear(120, 84).
H_IN = 38                     # input spatial size
H1 = H_IN - 4                 # conv1 output: 34
P1 = (H1 - 4) // 2 + 1        # pool1 output: 16
H2 = P1 - 4                   # conv2 output: 12
P2 = (H2 - 4) // 2 + 1        # pool2 output: 5   (conv3 5x5 -> 1x1 -> 120 features)
C1, C2, C3 = 6, 16, 120

_PARAM_ORDER = ("rhs1", "b1", "scol1", "srow1", "rhs2", "b2", "scol2", "srow2",
                "rhs3", "b3", "w4", "b4", "w5", "b5")


# --------------------------------------------------------------------------------------
# Fused Pallas kernel: one batch sample per grid step, whole network runs out of VMEM.
# Activation layout throughout: (height rows, channel*width lanes).
# --------------------------------------------------------------------------------------
def _lenet_kernel(x_ref, rhs1_ref, b1_ref, scol1_ref, srow1_ref,
                  rhs2_ref, b2_ref, scol2_ref, srow2_ref,
                  rhs3_ref, b3_ref, w4_ref, b4_ref, w5_ref, b5_ref, o_ref):

    def dot(a, b):
        # bf16 MXU operands (single pass, half the weight DMA), f32 accumulation.
        return jnp.dot(a.astype(jnp.bfloat16), b.astype(jnp.bfloat16),
                       preferred_element_type=jnp.float32)

    def conv_relu(act, rhs_ref, b_ref):
        # act: (H, Cin*W).  The 5x5 conv is 5 row-shifted matmuls against banded
        # (Toeplitz-over-width) weight slabs: each matmul contracts (Cin, kw) in one MXU
        # pass, the 5 kh taps accumulate in f32.  No im2col, no K padding.
        rows = act.shape[0] - 4
        acc = dot(act[0:rows, :], rhs_ref[0])
        for ki in range(1, 5):
            acc = acc + dot(act[ki:ki + rows, :], rhs_ref[ki])
        return jnp.maximum(acc + b_ref[...], 0.0)               # (H-4, Cout*Wout)

    def maxpool_4x4_s2(act, scol_ref, srow_ref):
        # 4-wide running max along lanes then sublanes (VPU, pairwise tree), stride-2
        # selection done as exact 0/1 matmuls (no strided gathers, no layout transposes).
        m = jnp.maximum(act[:, :-1], act[:, 1:])
        m = jnp.maximum(m[:, :-2], m[:, 2:])                    # m[:, c] = max act[:, c:c+4]
        m = dot(m, scol_ref[...])                               # keep cols  co*W + 2*pj
        h = jnp.maximum(m[:-1, :], m[1:, :])
        h = jnp.maximum(h[:-2, :], h[2:, :])                    # h[r, :] = max m[r:r+4, :]
        return dot(srow_ref[...], h)                            # keep rows 2*pi

    y = conv_relu(x_ref[0], rhs1_ref, b1_ref)                   # conv1+relu (34, 6*34)
    y = maxpool_4x4_s2(y, scol1_ref, srow1_ref)                 # pool1      (16, 6*16)
    y = conv_relu(y, rhs2_ref, b2_ref)                          # conv2+relu (12, 16*12)
    y = maxpool_4x4_s2(y, scol2_ref, srow2_ref)                 # pool2      (5, 16*5)
    # TODO(synk): reference forward() omits conv3 yet feeds the flatten into fc1(120), which can
    # never match; the intended LeNet path applies conv3 (5x5 spatial -> 1x1, 120 channels).
    y = conv_relu(y, rhs3_ref, b3_ref)                          # conv3+relu (1, 120) == flatten
    # TODO(synk): reference forward() calls undefined self.relu3 / self.fc2; the head goes
    # straight to fc1+relu and fc3+sigmoid as intended.
    y = jnp.maximum(dot(y, w4_ref[...]) + b4_ref[...], 0.0)     # fc1+relu   (1, 84)
    y = dot(y, w5_ref[...]) + b5_ref[...]                       # fc3        (1, 10)
    y = pl.reciprocal(1.0 + jnp.exp(-y), approx=True)           # sigmoid, reciprocal on the EUP
    o_ref[...] = y[None, :, :].astype(o_ref.dtype)


# --------------------------------------------------------------------------------------
# One-time weight packing (PyTorch layouts -> kernel matmul operands).
# --------------------------------------------------------------------------------------
def _banded_weight(w, w_in):
    """(Cout,Cin,5,5) -> (5, Cin*w_in, Cout*w_out) so conv == sum_ki act[ki:ki+rows] @ rhs[ki]."""
    cout, cin, kh, kw = w.shape
    w_out = w_in - kw + 1
    rhs = np.zeros((kh, cin * w_in, cout * w_out), np.float32)
    for ki in range(kh):
        for ci in range(cin):
            for co in range(cout):
                for j in range(w_out):
                    rhs[ki, ci * w_in + j:ci * w_in + j + kw, co * w_out + j] = w[co, ci, ki, :]
    return rhs


def _pool_col_select(c, w_in):
    """0/1 matrix picking column co*w_in + 2*pj after the 4-wide width max."""
    p = (w_in - 4) // 2 + 1
    s = np.zeros((c * w_in - 3, c * p), np.float32)
    for co in range(c):
        for pj in range(p):
            s[co * w_in + 2 * pj, co * p + pj] = 1.0
    return s


def _pool_row_select(h_in):
    """0/1 matrix picking row 2*pi after the 4-wide height max."""
    p = (h_in - 4) // 2 + 1
    s = np.zeros((p, h_in - 3), np.float32)
    for pi in range(p):
        s[pi, 2 * pi] = 1.0
    return s


def init_params(key):
    """PyTorch-style uniform(-1/sqrt(fan_in), 1/sqrt(fan_in)) init, PyTorch layouts."""
    def u(k, shape, fan_in):
        bound = 1.0 / float(np.sqrt(fan_in))
        return jax.random.uniform(k, shape, jnp.float32, -bound, bound)

    ks = jax.random.split(key, 10)
    return {
        "conv1_w": u(ks[0], (C1, 1, 5, 5), 1 * 25), "conv1_b": u(ks[1], (C1,), 1 * 25),
        "conv2_w": u(ks[2], (C2, C1, 5, 5), C1 * 25), "conv2_b": u(ks[3], (C2,), C1 * 25),
        "conv3_w": u(ks[4], (C3, C2, 5, 5), C2 * 25), "conv3_b": u(ks[5], (C3,), C2 * 25),
        "fc1_w": u(ks[6], (84, C3), C3), "fc1_b": u(ks[7], (84,), C3),
        "fc3_w": u(ks[8], (10, 84), 84), "fc3_b": u(ks[9], (10,), 84),
    }


def prepare_params(raw):
    g = lambda k: np.asarray(raw[k], np.float32)
    bf = lambda a: jnp.asarray(a, jnp.bfloat16)                       # MXU operands
    frow = lambda a: jnp.asarray(a, jnp.float32).reshape(1, -1)       # f32 bias rows
    return {
        "rhs1": bf(_banded_weight(g("conv1_w"), H_IN)),               # (5, 38, 204)
        "b1": frow(np.repeat(g("conv1_b"), H1)),                      # (1, 204)
        "scol1": bf(_pool_col_select(C1, H1)),                        # (201, 96)
        "srow1": bf(_pool_row_select(H1)),                            # (16, 31)
        "rhs2": bf(_banded_weight(g("conv2_w"), P1)),                 # (5, 96, 192)
        "b2": frow(np.repeat(g("conv2_b"), H2)),                      # (1, 192)
        "scol2": bf(_pool_col_select(C2, H2)),                        # (189, 80)
        "srow2": bf(_pool_row_select(H2)),                            # (5, 9)
        "rhs3": bf(_banded_weight(g("conv3_w"), P2)),                 # (5, 80, 120)
        "b3": frow(g("conv3_b")),                                     # (1, 120)
        "w4": bf(g("fc1_w").T), "b4": frow(g("fc1_b")),               # (120, 84), (1, 84)
        "w5": bf(g("fc3_w").T), "b5": frow(g("fc3_b")),               # (84, 10),  (1, 10)
    }


# --------------------------------------------------------------------------------------
# Forward: one pallas_call, grid over batch ("parallel" -> shards across v7x's 2 TCs).
# --------------------------------------------------------------------------------------
def _const_index_map(ndim):
    return lambda i: (0,) * ndim


@jax.jit
def model_forward(p, x):
    n = x.shape[0]
    x3 = x.reshape(n, H_IN, H_IN)                                     # (N,1,38,38) -> (N,38,38)
    weight_specs = [pl.BlockSpec(p[k].shape, _const_index_map(p[k].ndim)) for k in _PARAM_ORDER]
    out = pl.pallas_call(
        _lenet_kernel,
        out_shape=jax.ShapeDtypeStruct((n, 1, 10), jnp.float32),
        grid=(n,),
        in_specs=[pl.BlockSpec((1, H_IN, H_IN), lambda i: (i, 0, 0))] + weight_specs,
        out_specs=pl.BlockSpec((1, 1, 10), lambda i: (i, 0, 0)),
        compiler_params=pltpu.CompilerParams(dimension_semantics=("parallel",)),
    )(x3, *[p[k] for k in _PARAM_ORDER])
    return out.reshape(n, 10)


# --------------------------------------------------------------------------------------
# Plain-JAX reference of the intended path (for a loose numerical self-check).
# --------------------------------------------------------------------------------------
def reference_forward(raw, x):
    dn = ("NCHW", "OIHW", "NCHW")
    conv = lambda a, w: jax.lax.conv_general_dilated(a, w, (1, 1), "VALID", dimension_numbers=dn)
    pool = lambda a: jax.lax.reduce_window(a, -jnp.inf, jax.lax.max,
                                           (1, 1, 4, 4), (1, 1, 2, 2), "VALID")
    y = jnp.maximum(conv(x, raw["conv1_w"]) + raw["conv1_b"][None, :, None, None], 0.0)
    y = pool(y)
    y = jnp.maximum(conv(y, raw["conv2_w"]) + raw["conv2_b"][None, :, None, None], 0.0)
    y = pool(y)
    y = jnp.maximum(conv(y, raw["conv3_w"]) + raw["conv3_b"][None, :, None, None], 0.0)
    y = y.reshape(y.shape[0], -1)
    y = jnp.maximum(y @ raw["fc1_w"].T + raw["fc1_b"], 0.0)
    y = y @ raw["fc3_w"].T + raw["fc3_b"]
    return jax.nn.sigmoid(y)


if __name__ == "__main__":
    key = jax.random.PRNGKey(0)
    pkey, xkey = jax.random.split(key)
    raw = init_params(pkey)
    params = prepare_params(raw)
    # N=2, 1 input channel, 38x38 spatial: the conv/pool stack reduces to exactly 120 features
    # (120x1x1) before fc1, matching nn.Linear(120, 84).
    x = jax.random.normal(xkey, (2, 1, H_IN, H_IN), jnp.float32)

    out = jax.block_until_ready(model_forward(params, x))
    assert out.shape == (2, 10), out.shape
    assert bool(jnp.all(jnp.isfinite(out)))

    ref = reference_forward(raw, x)
    err = float(jnp.max(jnp.abs(out - ref)))
    assert err < 5e-2, f"max abs err vs reference = {err}"
    print("KERNEL_OK")
</pallas_src>

<mosaic_0001>
module attributes {stable_mosaic.version = 11 : i64} {
  func.func @_lenet_kernel(%arg0: i32, %arg1: memref<1x38x38xf32, #tpu.memory_space<vmem>>, %arg2: memref<5x38x204xbf16, #tpu.memory_space<vmem>>, %arg3: memref<1x204xf32, #tpu.memory_space<vmem>>, %arg4: memref<201x96xbf16, #tpu.memory_space<vmem>>, %arg5: memref<16x31xbf16, #tpu.memory_space<vmem>>, %arg6: memref<5x96x192xbf16, #tpu.memory_space<vmem>>, %arg7: memref<1x192xf32, #tpu.memory_space<vmem>>, %arg8: memref<189x80xbf16, #tpu.memory_space<vmem>>, %arg9: memref<5x9xbf16, #tpu.memory_space<vmem>>, %arg10: memref<5x80x120xbf16, #tpu.memory_space<vmem>>, %arg11: memref<1x120xf32, #tpu.memory_space<vmem>>, %arg12: memref<120x84xbf16, #tpu.memory_space<vmem>>, %arg13: memref<1x84xf32, #tpu.memory_space<vmem>>, %arg14: memref<84x10xbf16, #tpu.memory_space<vmem>>, %arg15: memref<1x10xf32, #tpu.memory_space<vmem>>, %arg16: memref<1x1x10xf32, #tpu.memory_space<vmem>>) attributes {dimension_semantics = [#tpu.dimension_semantics<parallel>], iteration_bounds = array<i64: 2>, scalar_prefetch = 0 : i64, scratch_operands = 0 : i64, tpu.core_type = #tpu.core_type<tc>, window_params = [{transform_indices = @transform_0, window_bounds = array<i64: 1, 38, 38>}, {pipeline_mode = #tpu.pipeline_mode<synchronous>, transform_indices = @transform_1, window_bounds = array<i64: 5, 38, 204>}, {pipeline_mode = #tpu.pipeline_mode<synchronous>, transform_indices = @transform_2, window_bounds = array<i64: 1, 204>}, {pipeline_mode = #tpu.pipeline_mode<synchronous>, transform_indices = @transform_3, window_bounds = array<i64: 201, 96>}, {pipeline_mode = #tpu.pipeline_mode<synchronous>, transform_indices = @transform_4, window_bounds = array<i64: 16, 31>}, {pipeline_mode = #tpu.pipeline_mode<synchronous>, transform_indices = @transform_5, window_bounds = array<i64: 5, 96, 192>}, {pipeline_mode = #tpu.pipeline_mode<synchronous>, transform_indices = @transform_6, window_bounds = array<i64: 1, 192>}, {pipeline_mode = #tpu.pipeline_mode<synchronous>, transform_indices = @transform_7, window_bounds = array<i64: 189, 80>}, {pipeline_mode = #tpu.pipeline_mode<synchronous>, transform_indices = @transform_8, window_bounds = array<i64: 5, 9>}, {pipeline_mode = #tpu.pipeline_mode<synchronous>, transform_indices = @transform_9, window_bounds = array<i64: 5, 80, 120>}, {pipeline_mode = #tpu.pipeline_mode<synchronous>, transform_indices = @transform_10, window_bounds = array<i64: 1, 120>}, {pipeline_mode = #tpu.pipeline_mode<synchronous>, transform_indices = @transform_11, window_bounds = array<i64: 120, 84>}, {pipeline_mode = #tpu.pipeline_mode<synchronous>, transform_indices = @transform_12, window_bounds = array<i64: 1, 84>}, {pipeline_mode = #tpu.pipeline_mode<synchronous>, transform_indices = @transform_13, window_bounds = array<i64: 84, 10>}, {pipeline_mode = #tpu.pipeline_mode<synchronous>, transform_indices = @transform_14, window_bounds = array<i64: 1, 10>}, {transform_indices = @transform_15, window_bounds = array<i64: 1, 1, 10>}]} {
    %c0 = arith.constant 0 : index
    %c0_0 = arith.constant 0 : index
    %c0_1 = arith.constant 0 : index
    %0 = vector.load %arg1[%c0, %c0_0, %c0_1] : memref<1x38x38xf32, #tpu.memory_space<vmem>>, vector<1x38x38xf32>
    %1 = vector.shape_cast %0 : vector<1x38x38xf32> to vector<38x38xf32>
    %2 = vector.extract_strided_slice %1 {offsets = [0, 0], sizes = [34, 38], strides = [1, 1]} : vector<38x38xf32> to vector<34x38xf32>
    %c0_2 = arith.constant 0 : index
    %c0_3 = arith.constant 0 : index
    %c0_4 = arith.constant 0 : index
    %3 = vector.load %arg2[%c0_2, %c0_3, %c0_4] : memref<5x38x204xbf16, #tpu.memory_space<vmem>>, vector<1x38x204xbf16>
    %4 = vector.shape_cast %3 : vector<1x38x204xbf16> to vector<38x204xbf16>
    %5 = arith.truncf %2 : vector<34x38xf32> to vector<34x38xbf16>
    %cst = arith.constant dense<0.000000e+00> : vector<34x204xf32>
    %6 = tpu.matmul %5, %4, %cst {dimension_numbers = #tpu.dot_dimension_numbers<[1], [0], [0], [1], [0, 0, 1, 1], [], []>} : vector<34x38xbf16>, vector<38x204xbf16>, vector<34x204xf32> -> vector<34x204xf32>
    %7 = vector.extract_strided_slice %1 {offsets = [1, 0], sizes = [34, 38], strides = [1, 1]} : vector<38x38xf32> to vector<34x38xf32>
    %c1 = arith.constant 1 : index
    %c0_5 = arith.constant 0 : index
    %c0_6 = arith.constant 0 : index
    %8 = vector.load %arg2[%c1, %c0_5, %c0_6] : memref<5x38x204xbf16, #tpu.memory_space<vmem>>, vector<1x38x204xbf16>
    %9 = vector.shape_cast %8 : vector<1x38x204xbf16> to vector<38x204xbf16>
    %10 = arith.truncf %7 : vector<34x38xf32> to vector<34x38xbf16>
    %cst_7 = arith.constant dense<0.000000e+00> : vector<34x204xf32>
    %11 = tpu.matmul %10, %9, %cst_7 {dimension_numbers = #tpu.dot_dimension_numbers<[1], [0], [0], [1], [0, 0, 1, 1], [], []>} : vector<34x38xbf16>, vector<38x204xbf16>, vector<34x204xf32> -> vector<34x204xf32>
    %12 = arith.addf %6, %11 : vector<34x204xf32>
    %13 = vector.extract_strided_slice %1 {offsets = [2, 0], sizes = [34, 38], strides = [1, 1]} : vector<38x38xf32> to vector<34x38xf32>
    %c2 = arith.constant 2 : index
    %c0_8 = arith.constant 0 : index
    %c0_9 = arith.constant 0 : index
    %14 = vector.load %arg2[%c2, %c0_8, %c0_9] : memref<5x38x204xbf16, #tpu.memory_space<vmem>>, vector<1x38x204xbf16>
    %15 = vector.shape_cast %14 : vector<1x38x204xbf16> to vector<38x204xbf16>
    %16 = arith.truncf %13 : vector<34x38xf32> to vector<34x38xbf16>
    %cst_10 = arith.constant dense<0.000000e+00> : vector<34x204xf32>
    %17 = tpu.matmul %16, %15, %cst_10 {dimension_numbers = #tpu.dot_dimension_numbers<[1], [0], [0], [1], [0, 0, 1, 1], [], []>} : vector<34x38xbf16>, vector<38x204xbf16>, vector<34x204xf32> -> vector<34x204xf32>
    %18 = arith.addf %12, %17 : vector<34x204xf32>
    %19 = vector.extract_strided_slice %1 {offsets = [3, 0], sizes = [34, 38], strides = [1, 1]} : vector<38x38xf32> to vector<34x38xf32>
    %c3 = arith.constant 3 : index
    %c0_11 = arith.constant 0 : index
    %c0_12 = arith.constant 0 : index
    %20 = vector.load %arg2[%c3, %c0_11, %c0_12] : memref<5x38x204xbf16, #tpu.memory_space<vmem>>, vector<1x38x204xbf16>
    %21 = vector.shape_cast %20 : vector<1x38x204xbf16> to vector<38x204xbf16>
    %22 = arith.truncf %19 : vector<34x38xf32> to vector<34x38xbf16>
    %cst_13 = arith.constant dense<0.000000e+00> : vector<34x204xf32>
    %23 = tpu.matmul %22, %21, %cst_13 {dimension_numbers = #tpu.dot_dimension_numbers<[1], [0], [0], [1], [0, 0, 1, 1], [], []>} : vector<34x38xbf16>, vector<38x204xbf16>, vector<34x204xf32> -> vector<34x204xf32>
    %24 = arith.addf %18, %23 : vector<34x204xf32>
    %25 = vector.extract_strided_slice %1 {offsets = [4, 0], sizes = [34, 38], strides = [1, 1]} : vector<38x38xf32> to vector<34x38xf32>
    %c4 = arith.constant 4 : index
    %c0_14 = arith.constant 0 : index
    %c0_15 = arith.constant 0 : index
    %26 = vector.load %arg2[%c4, %c0_14, %c0_15] : memref<5x38x204xbf16, #tpu.memory_space<vmem>>, vector<1x38x204xbf16>
    %27 = vector.shape_cast %26 : vector<1x38x204xbf16> to vector<38x204xbf16>
    %28 = arith.truncf %25 : vector<34x38xf32> to vector<34x38xbf16>
    %cst_16 = arith.constant dense<0.000000e+00> : vector<34x204xf32>
    %29 = tpu.matmul %28, %27, %cst_16 {dimension_numbers = #tpu.dot_dimension_numbers<[1], [0], [0], [1], [0, 0, 1, 1], [], []>} : vector<34x38xbf16>, vector<38x204xbf16>, vector<34x204xf32> -> vector<34x204xf32>
    %30 = arith.addf %24, %29 : vector<34x204xf32>
    %c0_17 = arith.constant 0 : index
    %c0_18 = arith.constant 0 : index
    %31 = vector.load %arg3[%c0_17, %c0_18] : memref<1x204xf32, #tpu.memory_space<vmem>>, vector<1x204xf32>
    %32 = vector.broadcast %31 : vector<1x204xf32> to vector<34x204xf32>
    %33 = arith.addf %30, %32 : vector<34x204xf32>
    %cst_19 = arith.constant 0.000000e+00 : f32
    %34 = vector.broadcast %cst_19 : f32 to vector<34x204xf32>
    %35 = arith.maximumf %33, %34 : vector<34x204xf32>
    %36 = vector.extract_strided_slice %35 {offsets = [0, 0], sizes = [34, 203], strides = [1, 1]} : vector<34x204xf32> to vector<34x203xf32>
    %37 = vector.extract_strided_slice %35 {offsets = [0, 1], sizes = [34, 203], strides = [1, 1]} : vector<34x204xf32> to vector<34x203xf32>
    %38 = arith.maximumf %36, %37 : vector<34x203xf32>
    %39 = vector.extract_strided_slice %38 {offsets = [0, 0], sizes = [34, 201], strides = [1, 1]} : vector<34x203xf32> to vector<34x201xf32>
    %40 = vector.extract_strided_slice %38 {offsets = [0, 2], sizes = [34, 201], strides = [1, 1]} : vector<34x203xf32> to vector<34x201xf32>
    %41 = arith.maximumf %39, %40 : vector<34x201xf32>
    %c0_20 = arith.constant 0 : index
    %c0_21 = arith.constant 0 : index
    %42 = vector.load %arg4[%c0_20, %c0_21] : memref<201x96xbf16, #tpu.memory_space<vmem>>, vector<201x96xbf16>
    %43 = arith.truncf %41 : vector<34x201xf32> to vector<34x201xbf16>
    %cst_22 = arith.constant dense<0.000000e+00> : vector<34x96xf32>
    %44 = tpu.matmul %43, %42, %cst_22 {dimension_numbers = #tpu.dot_dimension_numbers<[1], [0], [0], [1], [0, 0, 1, 1], [], []>} : vector<34x201xbf16>, vector<201x96xbf16>, vector<34x96xf32> -> vector<34x96xf32>
    %45 = vector.extract_strided_slice %44 {offsets = [0, 0], sizes = [33, 96], strides = [1, 1]} : vector<34x96xf32> to vector<33x96xf32>
    %46 = vector.extract_strided_slice %44 {offsets = [1, 0], sizes = [33, 96], strides = [1, 1]} : vector<34x96xf32> to vector<33x96xf32>
    %47 = arith.maximumf %45, %46 : vector<33x96xf32>
    %48 = vector.extract_strided_slice %47 {offsets = [0, 0], sizes = [31, 96], strides = [1, 1]} : vector<33x96xf32> to vector<31x96xf32>
    %49 = vector.extract_strided_slice %47 {offsets = [2, 0], sizes = [31, 96], strides = [1, 1]} : vector<33x96xf32> to vector<31x96xf32>
    %50 = arith.maximumf %48, %49 : vector<31x96xf32>
    %c0_23 = arith.constant 0 : index
    %c0_24 = arith.constant 0 : index
    %51 = vector.load %arg5[%c0_23, %c0_24] : memref<16x31xbf16, #tpu.memory_space<vmem>>, vector<16x31xbf16>
    %52 = arith.truncf %50 : vector<31x96xf32> to vector<31x96xbf16>
    %cst_25 = arith.constant dense<0.000000e+00> : vector<16x96xf32>
    %53 = tpu.matmul %51, %52, %cst_25 {dimension_numbers = #tpu.dot_dimension_numbers<[1], [0], [0], [1], [0, 0, 1, 1], [], []>} : vector<16x31xbf16>, vector<31x96xbf16>, vector<16x96xf32> -> vector<16x96xf32>
    %54 = vector.extract_strided_slice %53 {offsets = [0, 0], sizes = [12, 96], strides = [1, 1]} : vector<16x96xf32> to vector<12x96xf32>
    %c0_26 = arith.constant 0 : index
    %c0_27 = arith.constant 0 : index
    %c0_28 = arith.constant 0 : index
    %55 = vector.load %arg6[%c0_26, %c0_27, %c0_28] : memref<5x96x192xbf16, #tpu.memory_space<vmem>>, vector<1x96x192xbf16>
    %56 = vector.shape_cast %55 : vector<1x96x192xbf16> to vector<96x192xbf16>
    %57 = arith.truncf %54 : vector<12x96xf32> to vector<12x96xbf16>
    %cst_29 = arith.constant dense<0.000000e+00> : vector<12x192xf32>
    %58 = tpu.matmul %57, %56, %cst_29 {dimension_numbers = #tpu.dot_dimension_numbers<[1], [0], [0], [1], [0, 0, 1, 1], [], []>} : vector<12x96xbf16>, vector<96x192xbf16>, vector<12x192xf32> -> vector<12x192xf32>
    %59 = vector.extract_strided_slice %53 {offsets = [1, 0], sizes = [12, 96], strides = [1, 1]} : vector<16x96xf32> to vector<12x96xf32>
    %c1_30 = arith.constant 1 : index
    %c0_31 = arith.constant 0 : index
    %c0_32 = arith.constant 0 : index
    %60 = vector.load %arg6[%c1_30, %c0_31, %c0_32] : memref<5x96x192xbf16, #tpu.memory_space<vmem>>, vector<1x96x192xbf16>
    %61 = vector.shape_cast %60 : vector<1x96x192xbf16> to vector<96x192xbf16>
    %62 = arith.truncf %59 : vector<12x96xf32> to vector<12x96xbf16>
    %cst_33 = arith.constant dense<0.000000e+00> : vector<12x192xf32>
    %63 = tpu.matmul %62, %61, %cst_33 {dimension_numbers = #tpu.dot_dimension_numbers<[1], [0], [0], [1], [0, 0, 1, 1], [], []>} : vector<12x96xbf16>, vector<96x192xbf16>, vector<12x192xf32> -> vector<12x192xf32>
    %64 = arith.addf %58, %63 : vector<12x192xf32>
    %65 = vector.extract_strided_slice %53 {offsets = [2, 0], sizes = [12, 96], strides = [1, 1]} : vector<16x96xf32> to vector<12x96xf32>
    %c2_34 = arith.constant 2 : index
    %c0_35 = arith.constant 0 : index
    %c0_36 = arith.constant 0 : index
    %66 = vector.load %arg6[%c2_34, %c0_35, %c0_36] : memref<5x96x192xbf16, #tpu.memory_space<vmem>>, vector<1x96x192xbf16>
    %67 = vector.shape_cast %66 : vector<1x96x192xbf16> to vector<96x192xbf16>
    %68 = arith.truncf %65 : vector<12x96xf32> to vector<12x96xbf16>
    %cst_37 = arith.constant dense<0.000000e+00> : vector<12x192xf32>
    %69 = tpu.matmul %68, %67, %cst_37 {dimension_numbers = #tpu.dot_dimension_numbers<[1], [0], [0], [1], [0, 0, 1, 1], [], []>} : vector<12x96xbf16>, vector<96x192xbf16>, vector<12x192xf32> -> vector<12x192xf32>
    %70 = arith.addf %64, %69 : vector<12x192xf32>
    %71 = vector.extract_strided_slice %53 {offsets = [3, 0], sizes = [12, 96], strides = [1, 1]} : vector<16x96xf32> to vector<12x96xf32>
    %c3_38 = arith.constant 3 : index
    %c0_39 = arith.constant 0 : index
    %c0_40 = arith.constant 0 : index
    %72 = vector.load %arg6[%c3_38, %c0_39, %c0_40] : memref<5x96x192xbf16, #tpu.memory_space<vmem>>, vector<1x96x192xbf16>
    %73 = vector.shape_cast %72 : vector<1x96x192xbf16> to vector<96x192xbf16>
    %74 = arith.truncf %71 : vector<12x96xf32> to vector<12x96xbf16>
    %cst_41 = arith.constant dense<0.000000e+00> : vector<12x192xf32>
    %75 = tpu.matmul %74, %73, %cst_41 {dimension_numbers = #tpu.dot_dimension_numbers<[1], [0], [0], [1], [0, 0, 1, 1], [], []>} : vector<12x96xbf16>, vector<96x192xbf16>, vector<12x192xf32> -> vector<12x192xf32>
    %76 = arith.addf %70, %75 : vector<12x192xf32>
    %77 = vector.extract_strided_slice %53 {offsets = [4, 0], sizes = [12, 96], strides = [1, 1]} : vector<16x96xf32> to vector<12x96xf32>
    %c4_42 = arith.constant 4 : index
    %c0_43 = arith.constant 0 : index
    %c0_44 = arith.constant 0 : index
    %78 = vector.load %arg6[%c4_42, %c0_43, %c0_44] : memref<5x96x192xbf16, #tpu.memory_space<vmem>>, vector<1x96x192xbf16>
    %79 = vector.shape_cast %78 : vector<1x96x192xbf16> to vector<96x192xbf16>
    %80 = arith.truncf %77 : vector<12x96xf32> to vector<12x96xbf16>
    %cst_45 = arith.constant dense<0.000000e+00> : vector<12x192xf32>
    %81 = tpu.matmul %80, %79, %cst_45 {dimension_numbers = #tpu.dot_dimension_numbers<[1], [0], [0], [1], [0, 0, 1, 1], [], []>} : vector<12x96xbf16>, vector<96x192xbf16>, vector<12x192xf32> -> vector<12x192xf32>
    %82 = arith.addf %76, %81 : vector<12x192xf32>
    %c0_46 = arith.constant 0 : index
    %c0_47 = arith.constant 0 : index
    %83 = vector.load %arg7[%c0_46, %c0_47] : memref<1x192xf32, #tpu.memory_space<vmem>>, vector<1x192xf32>
    %84 = vector.broadcast %83 : vector<1x192xf32> to vector<12x192xf32>
    %85 = arith.addf %82, %84 : vector<12x192xf32>
    %cst_48 = arith.constant 0.000000e+00 : f32
    %86 = vector.broadcast %cst_48 : f32 to vector<12x192xf32>
    %87 = arith.maximumf %85, %86 : vector<12x192xf32>
    %88 = vector.extract_strided_slice %87 {offsets = [0, 0], sizes = [12, 191], strides = [1, 1]} : vector<12x192xf32> to vector<12x191xf32>
    %89 = vector.extract_strided_slice %87 {offsets = [0, 1], sizes = [12, 191], strides = [1, 1]} : vector<12x192xf32> to vector<12x191xf32>
    %90 = arith.maximumf %88, %89 : vector<12x191xf32>
    %91 = vector.extract_strided_slice %90 {offsets = [0, 0], sizes = [12, 189], strides = [1, 1]} : vector<12x191xf32> to vector<12x189xf32>
    %92 = vector.extract_strided_slice %90 {offsets = [0, 2], sizes = [12, 189], strides = [1, 1]} : vector<12x191xf32> to vector<12x189xf32>
    %93 = arith.maximumf %91, %92 : vector<12x189xf32>
    %c0_49 = arith.constant 0 : index
    %c0_50 = arith.constant 0 : index
    %94 = vector.load %arg8[%c0_49, %c0_50] : memref<189x80xbf16, #tpu.memory_space<vmem>>, vector<189x80xbf16>
    %95 = arith.truncf %93 : vector<12x189xf32> to vector<12x189xbf16>
    %cst_51 = arith.constant dense<0.000000e+00> : vector<12x80xf32>
    %96 = tpu.matmul %95, %94, %cst_51 {dimension_numbers = #tpu.dot_dimension_numbers<[1], [0], [0], [1], [0, 0, 1, 1], [], []>} : vector<12x189xbf16>, vector<189x80xbf16>, vector<12x80xf32> -> vector<12x80xf32>
    %97 = vector.extract_strided_slice %96 {offsets = [0, 0], sizes = [11, 80], strides = [1, 1]} : vector<12x80xf32> to vector<11x80xf32>
    %98 = vector.extract_strided_slice %96 {offsets = [1, 0], sizes = [11, 80], strides = [1, 1]} : vector<12x80xf32> to vector<11x80xf32>
    %99 = arith.maximumf %97, %98 : vector<11x80xf32>
    %100 = vector.extract_strided_slice %99 {offsets = [0, 0], sizes = [9, 80], strides = [1, 1]} : vector<11x80xf32> to vector<9x80xf32>
    %101 = vector.extract_strided_slice %99 {offsets = [2, 0], sizes = [9, 80], strides = [1, 1]} : vector<11x80xf32> to vector<9x80xf32>
    %102 = arith.maximumf %100, %101 : vector<9x80xf32>
    %c0_52 = arith.constant 0 : index
    %c0_53 = arith.constant 0 : index
    %103 = vector.load %arg9[%c0_52, %c0_53] : memref<5x9xbf16, #tpu.memory_space<vmem>>, vector<5x9xbf16>
    %104 = arith.truncf %102 : vector<9x80xf32> to vector<9x80xbf16>
    %cst_54 = arith.constant dense<0.000000e+00> : vector<5x80xf32>
    %105 = tpu.matmul %103, %104, %cst_54 {dimension_numbers = #tpu.dot_dimension_numbers<[1], [0], [0], [1], [0, 0, 1, 1], [], []>} : vector<5x9xbf16>, vector<9x80xbf16>, vector<5x80xf32> -> vector<5x80xf32>
    %106 = vector.extract_strided_slice %105 {offsets = [0, 0], sizes = [1, 80], strides = [1, 1]} : vector<5x80xf32> to vector<1x80xf32>
    %c0_55 = arith.constant 0 : index
    %c0_56 = arith.constant 0 : index
    %c0_57 = arith.constant 0 : index
    %107 = vector.load %arg10[%c0_55, %c0_56, %c0_57] : memref<5x80x120xbf16, #tpu.memory_space<vmem>>, vector<1x80x120xbf16>
    %108 = vector.shape_cast %107 : vector<1x80x120xbf16> to vector<80x120xbf16>
    %109 = arith.truncf %106 : vector<1x80xf32> to vector<1x80xbf16>
    %cst_58 = arith.constant dense<0.000000e+00> : vector<1x120xf32>
    %110 = tpu.matmul %109, %108, %cst_58 {dimension_numbers = #tpu.dot_dimension_numbers<[1], [0], [0], [1], [0, 0, 1, 1], [], []>} : vector<1x80xbf16>, vector<80x120xbf16>, vector<1x120xf32> -> vector<1x120xf32>
    %111 = vector.extract_strided_slice %105 {offsets = [1, 0], sizes = [1, 80], strides = [1, 1]} : vector<5x80xf32> to vector<1x80xf32>
    %c1_59 = arith.constant 1 : index
    %c0_60 = arith.constant 0 : index
    %c0_61 = arith.constant 0 : index
    %112 = vector.load %arg10[%c1_59, %c0_60, %c0_61] : memref<5x80x120xbf16, #tpu.memory_space<vmem>>, vector<1x80x120xbf16>
    %113 = vector.shape_cast %112 : vector<1x80x120xbf16> to vector<80x120xbf16>
    %114 = arith.truncf %111 : vector<1x80xf32> to vector<1x80xbf16>
    %cst_62 = arith.constant dense<0.000000e+00> : vector<1x120xf32>
    %115 = tpu.matmul %114, %113, %cst_62 {dimension_numbers = #tpu.dot_dimension_numbers<[1], [0], [0], [1], [0, 0, 1, 1], [], []>} : vector<1x80xbf16>, vector<80x120xbf16>, vector<1x120xf32> -> vector<1x120xf32>
    %116 = arith.addf %110, %115 : vector<1x120xf32>
    %117 = vector.extract_strided_slice %105 {offsets = [2, 0], sizes = [1, 80], strides = [1, 1]} : vector<5x80xf32> to vector<1x80xf32>
    %c2_63 = arith.constant 2 : index
    %c0_64 = arith.constant 0 : index
    %c0_65 = arith.constant 0 : index
    %118 = vector.load %arg10[%c2_63, %c0_64, %c0_65] : memref<5x80x120xbf16, #tpu.memory_space<vmem>>, vector<1x80x120xbf16>
    %119 = vector.shape_cast %118 : vector<1x80x120xbf16> to vector<80x120xbf16>
    %120 = arith.truncf %117 : vector<1x80xf32> to vector<1x80xbf16>
    %cst_66 = arith.constant dense<0.000000e+00> : vector<1x120xf32>
    %121 = tpu.matmul %120, %119, %cst_66 {dimension_numbers = #tpu.dot_dimension_numbers<[1], [0], [0], [1], [0, 0, 1, 1], [], []>} : vector<1x80xbf16>, vector<80x120xbf16>, vector<1x120xf32> -> vector<1x120xf32>
    %122 = arith.addf %116, %121 : vector<1x120xf32>
    %123 = vector.extract_strided_slice %105 {offsets = [3, 0], sizes = [1, 80], strides = [1, 1]} : vector<5x80xf32> to vector<1x80xf32>
    %c3_67 = arith.constant 3 : index
    %c0_68 = arith.constant 0 : index
    %c0_69 = arith.constant 0 : index
    %124 = vector.load %arg10[%c3_67, %c0_68, %c0_69] : memref<5x80x120xbf16, #tpu.memory_space<vmem>>, vector<1x80x120xbf16>
    %125 = vector.shape_cast %124 : vector<1x80x120xbf16> to vector<80x120xbf16>
    %126 = arith.truncf %123 : vector<1x80xf32> to vector<1x80xbf16>
    %cst_70 = arith.constant dense<0.000000e+00> : vector<1x120xf32>
    %127 = tpu.matmul %126, %125, %cst_70 {dimension_numbers = #tpu.dot_dimension_numbers<[1], [0], [0], [1], [0, 0, 1, 1], [], []>} : vector<1x80xbf16>, vector<80x120xbf16>, vector<1x120xf32> -> vector<1x120xf32>
    %128 = arith.addf %122, %127 : vector<1x120xf32>
    %129 = vector.extract_strided_slice %105 {offsets = [4, 0], sizes = [1, 80], strides = [1, 1]} : vector<5x80xf32> to vector<1x80xf32>
    %c4_71 = arith.constant 4 : index
    %c0_72 = arith.constant 0 : index
    %c0_73 = arith.constant 0 : index
    %130 = vector.load %arg10[%c4_71, %c0_72, %c0_73] : memref<5x80x120xbf16, #tpu.memory_space<vmem>>, vector<1x80x120xbf16>
    %131 = vector.shape_cast %130 : vector<1x80x120xbf16> to vector<80x120xbf16>
    %132 = arith.truncf %129 : vector<1x80xf32> to vector<1x80xbf16>
    %cst_74 = arith.constant dense<0.000000e+00> : vector<1x120xf32>
    %133 = tpu.matmul %132, %131, %cst_74 {dimension_numbers = #tpu.dot_dimension_numbers<[1], [0], [0], [1], [0, 0, 1, 1], [], []>} : vector<1x80xbf16>, vector<80x120xbf16>, vector<1x120xf32> -> vector<1x120xf32>
    %134 = arith.addf %128, %133 : vector<1x120xf32>
    %c0_75 = arith.constant 0 : index
    %c0_76 = arith.constant 0 : index
    %135 = vector.load %arg11[%c0_75, %c0_76] : memref<1x120xf32, #tpu.memory_space<vmem>>, vector<1x120xf32>
    %136 = arith.addf %134, %135 : vector<1x120xf32>
    %cst_77 = arith.constant 0.000000e+00 : f32
    %137 = vector.broadcast %cst_77 : f32 to vector<1x120xf32>
    %138 = arith.maximumf %136, %137 : vector<1x120xf32>
    %c0_78 = arith.constant 0 : index
    %c0_79 = arith.constant 0 : index
    %139 = vector.load %arg12[%c0_78, %c0_79] : memref<120x84xbf16, #tpu.memory_space<vmem>>, vector<120x84xbf16>
    %140 = arith.truncf %138 : vector<1x120xf32> to vector<1x120xbf16>
    %cst_80 = arith.constant dense<0.000000e+00> : vector<1x84xf32>
    %141 = tpu.matmul %140, %139, %cst_80 {dimension_numbers = #tpu.dot_dimension_numbers<[1], [0], [0], [1], [0, 0, 1, 1], [], []>} : vector<1x120xbf16>, vector<120x84xbf16>, vector<1x84xf32> -> vector<1x84xf32>
    %c0_81 = arith.constant 0 : index
    %c0_82 = arith.constant 0 : index
    %142 = vector.load %arg13[%c0_81, %c0_82] : memref<1x84xf32, #tpu.memory_space<vmem>>, vector<1x84xf32>
    %143 = arith.addf %141, %142 : vector<1x84xf32>
    %cst_83 = arith.constant 0.000000e+00 : f32
    %144 = vector.broadcast %cst_83 : f32 to vector<1x84xf32>
    %145 = arith.maximumf %143, %144 : vector<1x84xf32>
    %c0_84 = arith.constant 0 : index
    %c0_85 = arith.constant 0 : index
    %146 = vector.load %arg14[%c0_84, %c0_85] : memref<84x10xbf16, #tpu.memory_space<vmem>>, vector<84x10xbf16>
    %147 = arith.truncf %145 : vector<1x84xf32> to vector<1x84xbf16>
    %cst_86 = arith.constant dense<0.000000e+00> : vector<1x10xf32>
    %148 = tpu.matmul %147, %146, %cst_86 {dimension_numbers = #tpu.dot_dimension_numbers<[1], [0], [0], [1], [0, 0, 1, 1], [], []>} : vector<1x84xbf16>, vector<84x10xbf16>, vector<1x10xf32> -> vector<1x10xf32>
    %c0_87 = arith.constant 0 : index
    %c0_88 = arith.constant 0 : index
    %149 = vector.load %arg15[%c0_87, %c0_88] : memref<1x10xf32, #tpu.memory_space<vmem>>, vector<1x10xf32>
    %150 = arith.addf %148, %149 : vector<1x10xf32>
    %cst_89 = arith.constant 0.000000e+00 : f32
    %151 = vector.broadcast %cst_89 : f32 to vector<1x10xf32>
    %152 = arith.subf %151, %150 : vector<1x10xf32>
    %153 = math.exp %152 : vector<1x10xf32>
    %cst_90 = arith.constant 1.000000e+00 : f32
    %154 = vector.broadcast %cst_90 : f32 to vector<1x10xf32>
    %155 = arith.addf %154, %153 : vector<1x10xf32>
    %156 = tpu.reciprocal %155 {approx = true} : vector<1x10xf32> -> vector<1x10xf32>
    %157 = vector.shape_cast %156 : vector<1x10xf32> to vector<1x1x10xf32>
    %c0_91 = arith.constant 0 : index
    %c0_92 = arith.constant 0 : index
    %c0_93 = arith.constant 0 : index
    %158 = vector.load %arg16[%c0_91, %c0_92, %c0_93] : memref<1x1x10xf32, #tpu.memory_space<vmem>>, vector<1x1x10xf32>
    tpu.vector_store %arg16[%c0_91, %c0_92, %c0_93], %157 {strides = array<i32>} : memref<1x1x10xf32, #tpu.memory_space<vmem>>, vector<1x1x10xf32>,
    return
  }
  func.func @transform_0(%arg0: i32) -> (i32, i32, i32) {
    %c0_i32 = arith.constant 0 : i32
    %c0_i32_0 = arith.constant 0 : i32
    %c0_i32_1 = arith.constant 0 : i32
    return %arg0, %c0_i32, %c0_i32_0 : i32, i32, i32
  }
  func.func @transform_1(%arg0: i32) -> (i32, i32, i32) {
    %c0_i32 = arith.constant 0 : i32
    %c0_i32_0 = arith.constant 0 : i32
    %c0_i32_1 = arith.constant 0 : i32
    %c0_i32_2 = arith.constant 0 : i32
    return %c0_i32, %c0_i32_0, %c0_i32_1 : i32, i32, i32
  }
  func.func @transform_2(%arg0: i32) -> (i32, i32) {
    %c0_i32 = arith.constant 0 : i32
    %c0_i32_0 = arith.constant 0 : i32
    %c0_i32_1 = arith.constant 0 : i32
    return %c0_i32, %c0_i32_0 : i32, i32
  }
  func.func @transform_3(%arg0: i32) -> (i32, i32) {
    %c0_i32 = arith.constant 0 : i32
    %c0_i32_0 = arith.constant 0 : i32
    %c0_i32_1 = arith.constant 0 : i32
    return %c0_i32, %c0_i32_0 : i32, i32
  }
  func.func @transform_4(%arg0: i32) -> (i32, i32) {
    %c0_i32 = arith.constant 0 : i32
    %c0_i32_0 = arith.constant 0 : i32
    %c0_i32_1 = arith.constant 0 : i32
    return %c0_i32, %c0_i32_0 : i32, i32
  }
  func.func @transform_5(%arg0: i32) -> (i32, i32, i32) {
    %c0_i32 = arith.constant 0 : i32
    %c0_i32_0 = arith.constant 0 : i32
    %c0_i32_1 = arith.constant 0 : i32
    %c0_i32_2 = arith.constant 0 : i32
    return %c0_i32, %c0_i32_0, %c0_i32_1 : i32, i32, i32
  }
  func.func @transform_6(%arg0: i32) -> (i32, i32) {
    %c0_i32 = arith.constant 0 : i32
    %c0_i32_0 = arith.constant 0 : i32
    %c0_i32_1 = arith.constant 0 : i32
    return %c0_i32, %c0_i32_0 : i32, i32
  }
  func.func @transform_7(%arg0: i32) -> (i32, i32) {
    %c0_i32 = arith.constant 0 : i32
    %c0_i32_0 = arith.constant 0 : i32
    %c0_i32_1 = arith.constant 0 : i32
    return %c0_i32, %c0_i32_0 : i32, i32
  }
  func.func @transform_8(%arg0: i32) -> (i32, i32) {
    %c0_i32 = arith.constant 0 : i32
    %c0_i32_0 = arith.constant 0 : i32
    %c0_i32_1 = arith.constant 0 : i32
    return %c0_i32, %c0_i32_0 : i32, i32
  }
  func.func @transform_9(%arg0: i32) -> (i32, i32, i32) {
    %c0_i32 = arith.constant 0 : i32
    %c0_i32_0 = arith.constant 0 : i32
    %c0_i32_1 = arith.constant 0 : i32
    %c0_i32_2 = arith.constant 0 : i32
    return %c0_i32, %c0_i32_0, %c0_i32_1 : i32, i32, i32
  }
  func.func @transform_10(%arg0: i32) -> (i32, i32) {
    %c0_i32 = arith.constant 0 : i32
    %c0_i32_0 = arith.constant 0 : i32
    %c0_i32_1 = arith.constant 0 : i32
    return %c0_i32, %c0_i32_0 : i32, i32
  }
  func.func @transform_11(%arg0: i32) -> (i32, i32) {
    %c0_i32 = arith.constant 0 : i32
    %c0_i32_0 = arith.constant 0 : i32
    %c0_i32_1 = arith.constant 0 : i32
    return %c0_i32, %c0_i32_0 : i32, i32
  }
  func.func @transform_12(%arg0: i32) -> (i32, i32) {
    %c0_i32 = arith.constant 0 : i32
    %c0_i32_0 = arith.constant 0 : i32
    %c0_i32_1 = arith.constant 0 : i32
    return %c0_i32, %c0_i32_0 : i32, i32
  }
  func.func @transform_13(%arg0: i32) -> (i32, i32) {
    %c0_i32 = arith.constant 0 : i32
    %c0_i32_0 = arith.constant 0 : i32
    %c0_i32_1 = arith.constant 0 : i32
    return %c0_i32, %c0_i32_0 : i32, i32
  }
  func.func @transform_14(%arg0: i32) -> (i32, i32) {
    %c0_i32 = arith.constant 0 : i32
    %c0_i32_0 = arith.constant 0 : i32
    %c0_i32_1 = arith.constant 0 : i32
    return %c0_i32, %c0_i32_0 : i32, i32
  }
  func.func @transform_15(%arg0: i32) -> (i32, i32, i32) {
    %c0_i32 = arith.constant 0 : i32
    %c0_i32_0 = arith.constant 0 : i32
    %c0_i32_1 = arith.constant 0 : i32
    return %arg0, %c0_i32, %c0_i32_0 : i32, i32, i32
  }
}

</mosaic_0001>

<llo_original>
// kernel: model_forward.1
$region0: #{model_forward.1}
  #allocation0 [shape = 'u32[]', space=smem, size = 0x4, offset = 0x4, fixed_abs, tag = 'smem constant byte address 0x4 - core index']
  #allocation1 [shape = 'u32[72,128]{1,0:T(1,128)}', space=vmem, size = 0x9000, scoped, tag = 'internal scratch']
  %s0 = inlined_call_operand.vmem [shape: f32[2,38,38], index: 0, kind: input, shape index: {}]
  %s1 = inlined_call_operand.vmem [shape: bf16[5,38,204], index: 1, kind: input, shape index: {}]
  %s2 = inlined_call_operand.vmem [shape: f32[1,204], index: 2, kind: input, shape index: {}]
  %s3 = inlined_call_operand.vmem [shape: bf16[201,96], index: 3, kind: input, shape index: {}]
  %s4 = inlined_call_operand.vmem [shape: bf16[16,31], index: 4, kind: input, shape index: {}]
  %s5 = inlined_call_operand.hbm [shape: bf16[5,96,192], index: 5, kind: input, shape index: {}]
  %s6 = inlined_call_operand.vmem [shape: f32[1,192], index: 6, kind: input, shape index: {}]
  %s7 = inlined_call_operand.vmem [shape: bf16[189,80], index: 7, kind: input, shape index: {}]
  %s8 = inlined_call_operand.vmem [shape: bf16[5,9], index: 8, kind: input, shape index: {}]
  %s9 = inlined_call_operand.hbm [shape: bf16[5,80,120], index: 9, kind: input, shape index: {}]
  %s10 = inlined_call_operand.vmem [shape: f32[1,120], index: 10, kind: input, shape index: {}]
  %s11 = inlined_call_operand.vmem [shape: bf16[120,84], index: 11, kind: input, shape index: {}]
  %s12 = inlined_call_operand.vmem [shape: f32[1,84], index: 12, kind: input, shape index: {}]
  %s13 = inlined_call_operand.vmem [shape: bf16[84,10], index: 13, kind: input, shape index: {}]
  %s14 = inlined_call_operand.vmem [shape: f32[1,10], index: 14, kind: input, shape index: {}]
  %s15 = inlined_call_operand.hbm [shape: f32[2,1,10], index: 15, kind: output, shape index: {}]
  %s16 = sld [smem:[#allocation0]]
  $region101: #{model_forward.1} parent=0
    _
  %s18 = ssub.s32 1, %s16
  %s19 = scalar_select 0, %s18, %s16
  $region1: #{model_forward.1} parent=0
    #allocation2 [shape = 'u8[245760]{0}', space=vmem, size = 0x3c000, scoped, tag = 'input window, operand 5, single buffered']
    #allocation3 [shape = 's32[2]{0}', space=sflag, size = 0x8, scoped, tag = 'scoped memory for model_forward.1']
    #allocation4 [shape = 's32[2]{0}', space=sflag, size = 0x8, scoped, tag = 'scoped memory for model_forward.1']
    #allocation5 [shape = 'u8[102400]{0}', space=vmem, size = 0x19000, scoped, tag = 'input window, operand 9, single buffered']
    #allocation6 [shape = 's32[1]{0}', space=sflag, size = 0x4, scoped, tag = 'scoped memory for model_forward.1']
    #allocation7 [shape = 'u8[1024]{0}', space=vmem, size = 0x400, scoped, tag = 'output window, operand 0']
    %20 = vsyncpa [#allocation3], 0
    %21 = vsyncpa [#allocation6], 0
    %22 = vsyncpa [#allocation4], 0
    %s23 = scalar_lea.sflag [#allocation4], 1
    %24 = vsyncpa %s23, 0
    loop: start=0, step=1, limit=4
    $region2: #{model_forward.1} parent=1 // loop_pre_header
      _
    $region3: #{model_forward.1} parent=1 // loop_header
      %s26 = sphi 0, %s30
      %p27 = scmp.ge.s32.totalorder %s26, 4
      %s36 = sphi 0, %s38
      %s39 = sphi 0, %s36
      %s40 = sphi 0, %s39
      %s56 = sphi 0, %s40
      %s60 = sphi 0, %s60
      %s62 = sphi 0, %s60
      %s63 = sphi 0, %s62
      %s77 = sphi 0, %s63
      %s81 = sphi 0, %s81
      %s83 = sphi 0, %s81
      %s84 = sphi 0, %s83
      %s98 = sphi 0, %s84
      %s102 = sphi 0, %s102
      %s104 = sphi 0, %s102
      %s105 = sphi 0, %s104
      %s119 = sphi 0, %s105
      %s123 = sphi 0, %s123
      %s125 = sphi 0, %s123
      %s126 = sphi 0, %s125
      %s140 = sphi 0, %s126
      %s144 = sphi 0, %s144
      %s146 = sphi 0, %s144
      %s147 = sphi 0, %s146
      %s161 = sphi 0, %s147
      %s165 = sphi 0, %s165
      %s167 = sphi 0, %s165
      %s168 = sphi 0, %s167
      %s182 = sphi 0, %s168
      %s186 = sphi 0, %s186
      %s188 = sphi 0, %s186
      %s189 = sphi 0, %s188
      %s203 = sphi 0, %s189
      %s207 = sphi 0, %s207
      %s209 = sphi 0, %s207
      %s210 = sphi 0, %s209
      %s224 = sphi 0, %s210
      %s228 = sphi 0, %s228
      %s230 = sphi 0, %s228
      %s231 = sphi 0, %s230
      %s245 = sphi 0, %s231
      %s249 = sphi 0, %s249
      %s251 = sphi 0, %s249
      %s252 = sphi 0, %s251
      %s266 = sphi 0, %s252
      %s270 = sphi 0, %s270
      %s272 = sphi 0, %s270
      %s273 = sphi 0, %s272
      %s287 = sphi 0, %s273
      %s291 = sphi 0, %s291
      %s293 = sphi 0, %s291
      %s294 = sphi 0, %s293
      %s308 = sphi 0, %s294
      %s312 = sphi 0, %s312
      %s314 = sphi 0, %s312
      %s315 = sphi 0, %s314
      %s329 = sphi 0, %s315
      %s333 = sphi 0, %s333
      %s335 = sphi 0, %s333
      %s336 = sphi 0, %s335
      %s350 = sphi 0, %s336
      %s356 = sphi 0, %s358
      %s359 = sphi 0, %s356
      %s360 = sphi 0, %s359
      %s376 = sphi 0, %s360
    $region4: #{model_forward.1} parent=1 // loop_header_branch
      %29 = sbr.rel (%p27) target = $region8
    $region5: #{model_forward.1} parent=1 // loop_body
      %s31 = ssub.s32 %s26, 1
      %s32 = ssub.s32 %s26, 2
      %s33 = sadd.s32 %s26, 1
      %s34 = ssub.s32 %s26, %s33
      %p35 = scmp.eq.s32.totalorder %s34, 0
      %s37 = sadd.s32 %s36, 1
      %s38 = scalar_select %p35, %s36, %s37
      %p41 = pneg %p35
      %p42 = scmp.eq.s32.totalorder %s26, 1
      %p43 = por %p41, %p42
      %p44 = scmp.ne.s32.totalorder %s36, %s39
      %p45 = scmp.eq.s32.totalorder %s26, 0
      %p46 = por %p44, %p45
      %p47 = scmp.ne.s32.totalorder %s36, %s39
      %p48 = scmp.eq.s32.totalorder %s31, 1
      %p49 = por %p47, %p48
      %p50 = scmp.ne.s32.totalorder %s39, %s40
      %p51 = scmp.eq.s32.totalorder %s31, 0
      %p52 = por %p50, %p51
      %p53 = scmp.ne.s32.totalorder %s39, %s40
      %p54 = scmp.eq.s32.totalorder %s32, 1
      %p55 = por %p53, %p54
      %p57 = scmp.ne.s32.totalorder %s40, %s56
      %p58 = scmp.eq.s32.totalorder %s32, 0
      %p59 = por %p57, %p58
      %s61 = sadd.s32 %s60, 1
      %p64 = scmp.eq.s32.totalorder %s26, 1
      %p65 = scmp.ne.s32.totalorder %s60, %s62
      %p66 = scmp.eq.s32.totalorder %s26, 0
      %p67 = por %p65, %p66
      %p68 = scmp.ne.s32.totalorder %s60, %s62
      %p69 = scmp.eq.s32.totalorder %s31, 1
      %p70 = por %p68, %p69
      %p71 = scmp.ne.s32.totalorder %s62, %s63
      %p72 = scmp.eq.s32.totalorder %s31, 0
      %p73 = por %p71, %p72
      %p74 = scmp.ne.s32.totalorder %s62, %s63
      %p75 = scmp.eq.s32.totalorder %s32, 1
      %p76 = por %p74, %p75
      %p78 = scmp.ne.s32.totalorder %s63, %s77
      %p79 = scmp.eq.s32.totalorder %s32, 0
      %p80 = por %p78, %p79
      %s82 = sadd.s32 %s81, 1
      %p85 = scmp.eq.s32.totalorder %s26, 1
      %p86 = scmp.ne.s32.totalorder %s81, %s83
      %p87 = scmp.eq.s32.totalorder %s26, 0
      %p88 = por %p86, %p87
      %p89 = scmp.ne.s32.totalorder %s81, %s83
      %p90 = scmp.eq.s32.totalorder %s31, 1
      %p91 = por %p89, %p90
      %p92 = scmp.ne.s32.totalorder %s83, %s84
      %p93 = scmp.eq.s32.totalorder %s31, 0
      %p94 = por %p92, %p93
      %p95 = scmp.ne.s32.totalorder %s83, %s84
      %p96 = scmp.eq.s32.totalorder %s32, 1
      %p97 = por %p95, %p96
      %p99 = scmp.ne.s32.totalorder %s84, %s98
      %p100 = scmp.eq.s32.totalorder %s32, 0
      %p101 = por %p99, %p100
      %s103 = sadd.s32 %s102, 1
      %p106 = scmp.eq.s32.totalorder %s26, 1
      %p107 = scmp.ne.s32.totalorder %s102, %s104
      %p108 = scmp.eq.s32.totalorder %s26, 0
      %p109 = por %p107, %p108
      %p110 = scmp.ne.s32.totalorder %s102, %s104
      %p111 = scmp.eq.s32.totalorder %s31, 1
      %p112 = por %p110, %p111
      %p113 = scmp.ne.s32.totalorder %s104, %s105
      %p114 = scmp.eq.s32.totalorder %s31, 0
      %p115 = por %p113, %p114
      %p116 = scmp.ne.s32.totalorder %s104, %s105
      %p117 = scmp.eq.s32.totalorder %s32, 1
      %p118 = por %p116, %p117
      %p120 = scmp.ne.s32.totalorder %s105, %s119
      %p121 = scmp.eq.s32.totalorder %s32, 0
      %p122 = por %p120, %p121
      %s124 = sadd.s32 %s123, 1
      %p127 = scmp.eq.s32.totalorder %s26, 1
      %p128 = scmp.ne.s32.totalorder %s123, %s125
      %p129 = scmp.eq.s32.totalorder %s26, 0
      %p130 = por %p128, %p129
      %p131 = scmp.ne.s32.totalorder %s123, %s125
      %p132 = scmp.eq.s32.totalorder %s31, 1
      %p133 = por %p131, %p132
      %p134 = scmp.ne.s32.totalorder %s125, %s126
      %p135 = scmp.eq.s32.totalorder %s31, 0
      %p136 = por %p134, %p135
      %p137 = scmp.ne.s32.totalorder %s125, %s126
      %p138 = scmp.eq.s32.totalorder %s32, 1
      %p139 = por %p137, %p138
      %p141 = scmp.ne.s32.totalorder %s126, %s140
      %p142 = scmp.eq.s32.totalorder %s32, 0
      %p143 = por %p141, %p142
      %s145 = sadd.s32 %s144, 1
      %p148 = scmp.eq.s32.totalorder %s26, 1
      %p149 = scmp.ne.s32.totalorder %s144, %s146
      %p150 = scmp.eq.s32.totalorder %s26, 0
      %p151 = por %p149, %p150
      %p152 = scmp.ne.s32.totalorder %s144, %s146
      %p153 = scmp.eq.s32.totalorder %s31, 1
      %p154 = por %p152, %p153
      %p155 = scmp.ne.s32.totalorder %s146, %s147
      %p156 = scmp.eq.s32.totalorder %s31, 0
      %p157 = por %p155, %p156
      %p158 = scmp.ne.s32.totalorder %s146, %s147
      %p159 = scmp.eq.s32.totalorder %s32, 1
      %p160 = por %p158, %p159
      %p162 = scmp.ne.s32.totalorder %s147, %s161
      %p163 = scmp.eq.s32.totalorder %s32, 0
      %p164 = por %p162, %p163
      %s166 = sadd.s32 %s165, 1
      %p169 = scmp.eq.s32.totalorder %s26, 1
      %p170 = scmp.ne.s32.totalorder %s165, %s167
      %p171 = scmp.eq.s32.totalorder %s26, 0
      %p172 = por %p170, %p171
      %p173 = scmp.ne.s32.totalorder %s165, %s167
      %p174 = scmp.eq.s32.totalorder %s31, 1
      %p175 = por %p173, %p174
      %p176 = scmp.ne.s32.totalorder %s167, %s168
      %p177 = scmp.eq.s32.totalorder %s31, 0
      %p178 = por %p176, %p177
      %p179 = scmp.ne.s32.totalorder %s167, %s168
      %p180 = scmp.eq.s32.totalorder %s32, 1
      %p181 = por %p179, %p180
      %p183 = scmp.ne.s32.totalorder %s168, %s182
      %p184 = scmp.eq.s32.totalorder %s32, 0
      %p185 = por %p183, %p184
      %s187 = sadd.s32 %s186, 1
      %p190 = scmp.eq.s32.totalorder %s26, 1
      %p191 = scmp.ne.s32.totalorder %s186, %s188
      %p192 = scmp.eq.s32.totalorder %s26, 0
      %p193 = por %p191, %p192
      %p194 = scmp.ne.s32.totalorder %s186, %s188
      %p195 = scmp.eq.s32.totalorder %s31, 1
      %p196 = por %p194, %p195
      %p197 = scmp.ne.s32.totalorder %s188, %s189
      %p198 = scmp.eq.s32.totalorder %s31, 0
      %p199 = por %p197, %p198
      %p200 = scmp.ne.s32.totalorder %s188, %s189
      %p201 = scmp.eq.s32.totalorder %s32, 1
      %p202 = por %p200, %p201
      %p204 = scmp.ne.s32.totalorder %s189, %s203
      %p205 = scmp.eq.s32.totalorder %s32, 0
      %p206 = por %p204, %p205
      %s208 = sadd.s32 %s207, 1
      %p211 = scmp.eq.s32.totalorder %s26, 1
      %p212 = scmp.ne.s32.totalorder %s207, %s209
      %p213 = scmp.eq.s32.totalorder %s26, 0
      %p214 = por %p212, %p213
      %p215 = scmp.ne.s32.totalorder %s207, %s209
      %p216 = scmp.eq.s32.totalorder %s31, 1
      %p217 = por %p215, %p216
      %p218 = scmp.ne.s32.totalorder %s209, %s210
      %p219 = scmp.eq.s32.totalorder %s31, 0
      %p220 = por %p218, %p219
      %p221 = scmp.ne.s32.totalorder %s209, %s210
      %p222 = scmp.eq.s32.totalorder %s32, 1
      %p223 = por %p221, %p222
      %p225 = scmp.ne.s32.totalorder %s210, %s224
      %p226 = scmp.eq.s32.totalorder %s32, 0
      %p227 = por %p225, %p226
      %s229 = sadd.s32 %s228, 1
      %p232 = scmp.eq.s32.totalorder %s26, 1
      %p233 = scmp.ne.s32.totalorder %s228, %s230
      %p234 = scmp.eq.s32.totalorder %s26, 0
      %p235 = por %p233, %p234
      %p236 = scmp.ne.s32.totalorder %s228, %s230
      %p237 = scmp.eq.s32.totalorder %s31, 1
      %p238 = por %p236, %p237
      %p239 = scmp.ne.s32.totalorder %s230, %s231
      %p240 = scmp.eq.s32.totalorder %s31, 0
      %p241 = por %p239, %p240
      %p242 = scmp.ne.s32.totalorder %s230, %s231
      %p243 = scmp.eq.s32.totalorder %s32, 1
      %p244 = por %p242, %p243
      %p246 = scmp.ne.s32.totalorder %s231, %s245
      %p247 = scmp.eq.s32.totalorder %s32, 0
      %p248 = por %p246, %p247
      %s250 = sadd.s32 %s249, 1
      %p253 = scmp.eq.s32.totalorder %s26, 1
      %p254 = scmp.ne.s32.totalorder %s249, %s251
      %p255 = scmp.eq.s32.totalorder %s26, 0
      %p256 = por %p254, %p255
      %p257 = scmp.ne.s32.totalorder %s249, %s251
      %p258 = scmp.eq.s32.totalorder %s31, 1
      %p259 = por %p257, %p258
      %p260 = scmp.ne.s32.totalorder %s251, %s252
      %p261 = scmp.eq.s32.totalorder %s31, 0
      %p262 = por %p260, %p261
      %p263 = scmp.ne.s32.totalorder %s251, %s252
      %p264 = scmp.eq.s32.totalorder %s32, 1
      %p265 = por %p263, %p264
      %p267 = scmp.ne.s32.totalorder %s252, %s266
      %p268 = scmp.eq.s32.totalorder %s32, 0
      %p269 = por %p267, %p268
      %s271 = sadd.s32 %s270, 1
      %p274 = scmp.eq.s32.totalorder %s26, 1
      %p275 = scmp.ne.s32.totalorder %s270, %s272
      %p276 = scmp.eq.s32.totalorder %s26, 0
      %p277 = por %p275, %p276
      %p278 = scmp.ne.s32.totalorder %s270, %s272
      %p279 = scmp.eq.s32.totalorder %s31, 1
      %p280 = por %p278, %p279
      %p281 = scmp.ne.s32.totalorder %s272, %s273
      %p282 = scmp.eq.s32.totalorder %s31, 0
      %p283 = por %p281, %p282
      %p284 = scmp.ne.s32.totalorder %s272, %s273
      %p285 = scmp.eq.s32.totalorder %s32, 1
      %p286 = por %p284, %p285
      %p288 = scmp.ne.s32.totalorder %s273, %s287
      %p289 = scmp.eq.s32.totalorder %s32, 0
      %p290 = por %p288, %p289
      %s292 = sadd.s32 %s291, 1
      %p295 = scmp.eq.s32.totalorder %s26, 1
      %p296 = scmp.ne.s32.totalorder %s291, %s293
      %p297 = scmp.eq.s32.totalorder %s26, 0
      %p298 = por %p296, %p297
      %p299 = scmp.ne.s32.totalorder %s291, %s293
      %p300 = scmp.eq.s32.totalorder %s31, 1
      %p301 = por %p299, %p300
      %p302 = scmp.ne.s32.totalorder %s293, %s294
      %p303 = scmp.eq.s32.totalorder %s31, 0
      %p304 = por %p302, %p303
      %p305 = scmp.ne.s32.totalorder %s293, %s294
      %p306 = scmp.eq.s32.totalorder %s32, 1
      %p307 = por %p305, %p306
      %p309 = scmp.ne.s32.totalorder %s294, %s308
      %p310 = scmp.eq.s32.totalorder %s32, 0
      %p311 = por %p309, %p310
      %s313 = sadd.s32 %s312, 1
      %p316 = scmp.eq.s32.totalorder %s26, 1
      %p317 = scmp.ne.s32.totalorder %s312, %s314
      %p318 = scmp.eq.s32.totalorder %s26, 0
      %p319 = por %p317, %p318
      %p320 = scmp.ne.s32.totalorder %s312, %s314
      %p321 = scmp.eq.s32.totalorder %s31, 1
      %p322 = por %p320, %p321
      %p323 = scmp.ne.s32.totalorder %s314, %s315
      %p324 = scmp.eq.s32.totalorder %s31, 0
      %p325 = por %p323, %p324
      %p326 = scmp.ne.s32.totalorder %s314, %s315
      %p327 = scmp.eq.s32.totalorder %s32, 1
      %p328 = por %p326, %p327
      %p330 = scmp.ne.s32.totalorder %s315, %s329
      %p331 = scmp.eq.s32.totalorder %s32, 0
      %p332 = por %p330, %p331
      %s334 = sadd.s32 %s333, 1
      %p337 = scmp.eq.s32.totalorder %s26, 1
      %p338 = scmp.ne.s32.totalorder %s333, %s335
      %p339 = scmp.eq.s32.totalorder %s26, 0
      %p340 = por %p338, %p339
      %p341 = scmp.ne.s32.totalorder %s333, %s335
      %p342 = scmp.eq.s32.totalorder %s31, 1
      %p343 = por %p341, %p342
      %p344 = scmp.ne.s32.totalorder %s335, %s336
      %p345 = scmp.eq.s32.totalorder %s31, 0
      %p346 = por %p344, %p345
      %p347 = scmp.ne.s32.totalorder %s335, %s336
      %p348 = scmp.eq.s32.totalorder %s32, 1
      %p349 = por %p347, %p348
      %p351 = scmp.ne.s32.totalorder %s336, %s350
      %p352 = scmp.eq.s32.totalorder %s32, 0
      %p353 = por %p351, %p352
      %s354 = ssub.s32 %s26, %s33
      %p355 = scmp.eq.s32.totalorder %s354, 0
      %s357 = sadd.s32 %s356, 1
      %s358 = scalar_select %p355, %s356, %s357
      %p361 = pneg %p355
      %p362 = scmp.eq.s32.totalorder %s26, 1
      %p363 = por %p361, %p362
      %p364 = scmp.ne.s32.totalorder %s356, %s359
      %p365 = scmp.eq.s32.totalorder %s26, 0
      %p366 = por %p364, %p365
      %p367 = scmp.ne.s32.totalorder %s356, %s359
      %p368 = scmp.eq.s32.totalorder %s31, 1
      %p369 = por %p367, %p368
      %p370 = scmp.ne.s32.totalorder %s359, %s360
      %p371 = scmp.eq.s32.totalorder %s31, 0
      %p372 = por %p370, %p371
      %p373 = scmp.ne.s32.totalorder %s359, %s360
      %p374 = scmp.eq.s32.totalorder %s32, 1
      %p375 = por %p373, %p374
      %p377 = scmp.ne.s32.totalorder %s360, %s376
      %p378 = scmp.eq.s32.totalorder %s32, 0
      %p379 = por %p377, %p378
      %p380 = scmp.le.s32.totalorder 1, %s26
      %p381 = scmp.lt.s32.totalorder %s26, 3
      %p382 = pnand %p380, %p381
      %p383 = pneg %p382
      // Predicated region
      $region9: #{model_forward.1} parent=5 // pred_check
        _
      $region10: #{model_forward.1} parent=5 // pred_check_branch
        %385 = sbr.rel (%p382) target = $region12
      $region11: #{model_forward.1} parent=5 // pred_region
        %s386 = ssub.s32 %s26, 1
        // Predicated region
        $region13: #{model_forward.1} parent=11 // pred_check
          %p387 = pneg %p73
        $region14: #{model_forward.1} parent=11 // pred_check_branch
          %389 = sbr.rel (%p387) target = $region16
        $region15: #{model_forward.1} parent=11 // pred_region
          _
        $region16: #{model_forward.1} parent=11 // pred_fallthru
          _
        // Predicated region
        $region17: #{model_forward.1} parent=11 // pred_check
          %p390 = pneg %p94
        $region18: #{model_forward.1} parent=11 // pred_check_branch
          %392 = sbr.rel (%p390) target = $region20
        $region19: #{model_forward.1} parent=11 // pred_region
          _
        $region20: #{model_forward.1} parent=11 // pred_fallthru
          _
        // Predicated region
        $region21: #{model_forward.1} parent=11 // pred_check
          %p393 = pneg %p115
        $region22: #{model_forward.1} parent=11 // pred_check_branch
          %395 = sbr.rel (%p393) target = $region24
        $region23: #{model_forward.1} parent=11 // pred_region
          _
        $region24: #{model_forward.1} parent=11 // pred_fallthru
          _
        // Predicated region
        $region25: #{model_forward.1} parent=11 // pred_check
          %p396 = pneg %p136
        $region26: #{model_forward.1} parent=11 // pred_check_branch
          %398 = sbr.rel (%p396) target = $region28
        $region27: #{model_forward.1} parent=11 // pred_region
          _
        $region28: #{model_forward.1} parent=11 // pred_fallthru
          _
        // Predicated region
        $region29: #{model_forward.1} parent=11 // pred_check
          %p399 = pneg %p157
        $region30: #{model_forward.1} parent=11 // pred_check_branch
          %401 = sbr.rel (%p399) target = $region32
        $region31: #{model_forward.1} parent=11 // pred_region
          %403 = vsyncadd [#allocation3], 0
          %s404 = sshll.u32 %s5, 4
          %s405 = int_to_ptr.hbm [resolvable:$true] %s404
          %s406 = sshll.u32 [#allocation2], 4
          %s407 = int_to_ptr.vmem [resolvable:$true] %s406
          %412 = dma.hbm_to_vmem [thread:$0]  %s405, 7680, %s407, [#allocation3], 128, 128, 8
        $region32: #{model_forward.1} parent=11 // pred_fallthru
          _
        // Predicated region
        $region33: #{model_forward.1} parent=11 // pred_check
          %p413 = pneg %p178
        $region34: #{model_forward.1} parent=11 // pred_check_branch
          %415 = sbr.rel (%p413) target = $region36
        $region35: #{model_forward.1} parent=11 // pred_region
          _
        $region36: #{model_forward.1} parent=11 // pred_fallthru
          _
        // Predicated region
        $region37: #{model_forward.1} parent=11 // pred_check
          %p416 = pneg %p199
        $region38: #{model_forward.1} parent=11 // pred_check_branch
          %418 = sbr.rel (%p416) target = $region40
        $region39: #{model_forward.1} parent=11 // pred_region
          _
        $region40: #{model_forward.1} parent=11 // pred_fallthru
          _
        // Predicated region
        $region41: #{model_forward.1} parent=11 // pred_check
          %p419 = pneg %p220
        $region42: #{model_forward.1} parent=11 // pred_check_branch
          %421 = sbr.rel (%p419) target = $region44
        $region43: #{model_forward.1} parent=11 // pred_region
          _
        $region44: #{model_forward.1} parent=11 // pred_fallthru
          _
        // Predicated region
        $region45: #{model_forward.1} parent=11 // pred_check
          %p422 = pneg %p241
        $region46: #{model_forward.1} parent=11 // pred_check_branch
          %424 = sbr.rel (%p422) target = $region48
        $region47: #{model_forward.1} parent=11 // pred_region
          %426 = vsyncadd [#allocation6], 0
          %s427 = sshll.u32 %s9, 4
          %s428 = int_to_ptr.hbm [resolvable:$true] %s427
          %s429 = sshll.u32 [#allocation5], 4
          %s430 = int_to_ptr.vmem [resolvable:$true] %s429
          %435 = dma.hbm_to_vmem [thread:$0]  %s428, 3200, %s430, [#allocation6], 64, 64, 4
        $region48: #{model_forward.1} parent=11 // pred_fallthru
          _
        // Predicated region
        $region49: #{model_forward.1} parent=11 // pred_check
          %p436 = pneg %p262
        $region50: #{model_forward.1} parent=11 // pred_check_branch
          %438 = sbr.rel (%p436) target = $region52
        $region51: #{model_forward.1} parent=11 // pred_region
          _
        $region52: #{model_forward.1} parent=11 // pred_fallthru
          _
        // Predicated region
        $region53: #{model_forward.1} parent=11 // pred_check
          %p439 = pneg %p283
        $region54: #{model_forward.1} parent=11 // pred_check_branch
          %441 = sbr.rel (%p439) target = $region56
        $region55: #{model_forward.1} parent=11 // pred_region
          _
        $region56: #{model_forward.1} parent=11 // pred_fallthru
          _
        // Predicated region
        $region57: #{model_forward.1} parent=11 // pred_check
          %p442 = pneg %p304
        $region58: #{model_forward.1} parent=11 // pred_check_branch
          %444 = sbr.rel (%p442) target = $region60
        $region59: #{model_forward.1} parent=11 // pred_region
          _
        $region60: #{model_forward.1} parent=11 // pred_fallthru
          _
        // Predicated region
        $region61: #{model_forward.1} parent=11 // pred_check
          %p445 = pneg %p325
        $region62: #{model_forward.1} parent=11 // pred_check_branch
          %447 = sbr.rel (%p445) target = $region64
        $region63: #{model_forward.1} parent=11 // pred_region
          _
        $region64: #{model_forward.1} parent=11 // pred_fallthru
          _
        // Predicated region
        $region65: #{model_forward.1} parent=11 // pred_check
          %p448 = pneg %p346
        $region66: #{model_forward.1} parent=11 // pred_check_branch
          %450 = sbr.rel (%p448) target = $region68
        $region67: #{model_forward.1} parent=11 // pred_region
          _
        $region68: #{model_forward.1} parent=11 // pred_fallthru
          _
      $region12: #{model_forward.1} parent=5 // pred_fallthru
        _
      %p451 = scmp.lt.s32.totalorder %s26, 2
      // Predicated region
      $region69: #{model_forward.1} parent=5 // pred_check
        %p452 = pneg %p451
      $region70: #{model_forward.1} parent=5 // pred_check_branch
        %454 = sbr.rel (%p452) target = $region72
      $region71: #{model_forward.1} parent=5 // pred_region
        // Predicated region
        $region73: #{model_forward.1} parent=71 // pred_check
          %p455 = pneg %p46
        $region74: #{model_forward.1} parent=71 // pred_check_branch
          %457 = sbr.rel (%p455) target = $region76
        $region75: #{model_forward.1} parent=71 // pred_region
          %p458 = scmp.lt.s32.totalorder %s26, 1
          %s459 = scalar_select %p458, %s26, 1
          %s460 = smul.addr %s459, 5
          %s461 = smul.addr %s460, 8
          %s462 = scalar_lea.vmem %s0, %s461
        $region76: #{model_forward.1} parent=71 // pred_fallthru
          _
      $region72: #{model_forward.1} parent=5 // pred_fallthru
        _
      %p463 = scmp.le.s32.totalorder 1, %s26
      %p464 = scmp.lt.s32.totalorder %s26, 3
      %p465 = pnand %p463, %p464
      %p466 = pneg %p465
      // Predicated region
      $region77: #{model_forward.1} parent=5 // pred_check
        _
      $region78: #{model_forward.1} parent=5 // pred_check_branch
        %468 = sbr.rel (%p465) target = $region80
      $region79: #{model_forward.1} parent=5 // pred_region
        %s469 = ssub.s32 %s26, 1
        // Predicated region
        $region81: #{model_forward.1} parent=79 // pred_check
          %p470 = pneg %p157
        $region82: #{model_forward.1} parent=79 // pred_check_branch
          %472 = sbr.rel (%p470) target = $region84
        $region83: #{model_forward.1} parent=79 // pred_region
          %474 = dma.done [#allocation3], 7680
        $region84: #{model_forward.1} parent=79 // pred_fallthru
          _
        // Predicated region
        $region85: #{model_forward.1} parent=79 // pred_check
          %p475 = pneg %p241
        $region86: #{model_forward.1} parent=79 // pred_check_branch
          %477 = sbr.rel (%p475) target = $region88
        $region87: #{model_forward.1} parent=79 // pred_region
          %479 = dma.done [#allocation6], 3200
        $region88: #{model_forward.1} parent=79 // pred_fallthru
          _
        %p480 = scmp.lt.s32.totalorder %s31, 1
        %s481 = scalar_select %p480, %s31, 1
        %s482 = smul.addr %s481, 5
        %s483 = smul.addr %s482, 8
        %s484 = scalar_lea.vmem %s0, %s483
        %p485 = pneg %p52
        %p486 = pneg %p49
        %p487 = pneg %p73
        %p488 = pneg %p70
        %p489 = pneg %p94
        %p490 = pneg %p91
        %p491 = pneg %p115
        %p492 = pneg %p112
        %p493 = pneg %p136
        %p494 = pneg %p133
        %p495 = pneg %p157
        %p496 = pneg %p154
        %p497 = pneg %p178
        %p498 = pneg %p175
        %p499 = pneg %p199
        %p500 = pneg %p196
        %p501 = pneg %p220
        %p502 = pneg %p217
        %p503 = pneg %p241
        %p504 = pneg %p238
        %p505 = pneg %p262
        %p506 = pneg %p259
        %p507 = pneg %p283
        %p508 = pneg %p280
        %p509 = pneg %p304
        %p510 = pneg %p301
        %p511 = pneg %p325
        %p512 = pneg %p322
        %p513 = pneg %p346
        %p514 = pneg %p343
        %p515 = pneg %p372
        %p516 = pneg %p369
        %s517 = sand.u32 %s359, 1
        %s518 = scalar_lea.sflag [#allocation4], %s517
        %s519 = sand.u32 %s359, 1
        %s520 = scalar_lea.vmem [#allocation7], %s519
        %p521 = scmp.lt.s32.totalorder %s31, 1
        %s522 = scalar_select %p521, %s31, 1
        %s523 = smul.addr %s522, 5
        %s524 = smul.addr %s523, 8
        %s525 = scalar_lea.vmem %s0, %s524
        %v527 = vld [vmem:[%s525] sm:$0xff]
        %v528 = vld [vmem:[%s525 + $0x8] sm:$0xff]
        %v529 = vld [vmem:[%s525 + $0x10] sm:$0xff]
        %v530 = vld [vmem:[%s525 + $0x18] sm:$0xff]
        %v531 = vld [vmem:[%s525 + $0x20] sm:$0x3f]
        %v532 = vld [vmem:[%s1] sm:$0xff]
        %v533 = vld [vmem:[%s1 + $0x8] sm:$0xff]
        %v534 = vld [vmem:[%s1 + $0x10] sm:$0xff]
        %v535 = vld [vmem:[%s1 + $0x18] sm:$0xff]
        %v536 = vld [vmem:[%s1 + $0x20] sm:$0x77]
        %v537 = vpack.c.bf16 %v528, %v527
        %v538 = vpack.c.bf16 %v530, %v529
        %v539 = vpack.c.bf16 %v531, %v531
        %s540 = scalar_lea.vmem %s1, 40
        %v541 = vld [vmem:[%s540] sm:$0xff]
        %v542 = vld [vmem:[%s540 + $0x8] sm:$0xff]
        %v543 = vld [vmem:[%s540 + $0x10] sm:$0xff]
        %v544 = vld [vmem:[%s540 + $0x18] sm:$0xff]
        %v545 = vld [vmem:[%s540 + $0x20] sm:$0x77]
        %vm546 = vsmask.f32 7424
        %v548 = vshrl.u32 %v537, 16
        %v550 = vshll.u32 %v537, 16
        %v552 = vrot.slane %v550, 1
        %v553 = vor.u32 %v548, %v552
        %v555 = vshll.u32 %v538, 16
        %v557 = vrot.slane %v555, 1
        %v558 = vsel %vm546, %v553, %v557
        %v559 = vshrl.u32 %v538, 16
        %v561 = vor.u32 %v559, %v557
        %v563 = vshll.u32 %v539, 16
        %v565 = vrot.slane %v563, 1
        %v566 = vsel %vm546, %v561, %v565
        %v567 = vshrl.u32 %v539, 16
        %v569 = vor.u32 %v567, %v565
        %v575 = vunpack.c.l.b16 %v541
        %v576 = vunpack.c.h.b16 %v541
        %v577 = vunpack.c.l.b16 %v542
        %v578 = vunpack.c.h.b16 %v542
        %v579 = vunpack.c.l.b16 %v543
        %v580 = vunpack.c.h.b16 %v543
        %v581 = vunpack.c.l.b16 %v544
        %v582 = vunpack.c.h.b16 %v544
        %v583 = vunpack.c.l.b16 %v545
        %v584 = vunpack.c.h.b16 %v545
        %v585 = vpack.c.b16 %v577, %v575
        %v586 = vpack.c.b16 %v578, %v576
        %v587 = vpack.c.b16 %v581, %v579
        %v588 = vpack.c.b16 %v582, %v580
        %v589 = vpack.c.b16 %v583, %v583
        %v590 = vpack.c.b16 %v584, %v584
        %vm595 = vcmask 310272
        %v597 = vsel %vm595, %v558, 0
        %v600 = vsel %vm595, %v566, 0
        %v603 = vsel %vm595, %v569, 0
        %vm605 = vcmask 1042432
        %v607 = vsel %vm605, %v589, 0
        %v610 = vsel %vm605, %v590, 0
        %612 = vmatpush.bf16.msra.mxu0 0
        %613 = vmatpush.bf16.msra.mxu0 0
        %614 = vmatpush.bf16.msra.mxu0 0
        %615 = vmatpush.bf16.msra.mxu0 0
        %616 = vmatpush.bf16.msra.mxu0 0
        %617 = vmatpush.bf16.msra.mxu0 %v607
        %618 = vmatpush.bf16.msra.mxu0 %v587
        %619 = vmatpush.bf16.msra.mxu0 %v585
        %620 = vmatmul.bf16.gmra.mxu0 %v597
        %v621 = vpop.f32.mrf.mxu0
        %v622 = vadd.f32 0.0, %v621
        %v623 = vpop.f32.mrf.mxu0
        %v624 = vadd.f32 0.0, %v623
        %625 = vmatmul.bf16.gmra.mxu0 %v600
        %v626 = vpop.f32.mrf.mxu0
        %v627 = vadd.f32 0.0, %v626
        %v628 = vpop.f32.mrf.mxu0
        %v629 = vadd.f32 0.0, %v628
        %630 = vmatmul.bf16.gmra.mxu0 %v603
        %v631 = vpop.f32.mrf.mxu0
        %v632 = vadd.f32 0.0, %v631
        %v633 = vpop.f32.mrf.mxu0
        %634 = vdwg.mxu0
        %635 = vmatpush.bf16.msra.mxu0 0
        %636 = vmatpush.bf16.msra.mxu0 0
        %637 = vmatpush.bf16.msra.mxu0 0
        %638 = vmatpush.bf16.msra.mxu0 0
        %639 = vmatpush.bf16.msra.mxu0 0
        %640 = vmatpush.bf16.msra.mxu0 %v610
        %641 = vmatpush.bf16.msra.mxu0 %v588
        %642 = vmatpush.bf16.msra.mxu0 %v586
        %643 = vmatmul.bf16.gmra.mxu0 %v597
        %v644 = vpop.f32.mrf.mxu0
        %v645 = vadd.f32 0.0, %v644
        %v646 = vpop.f32.mrf.mxu0
        %v647 = vadd.f32 0.0, %v646
        %648 = vmatmul.bf16.gmra.mxu0 %v600
        %v649 = vpop.f32.mrf.mxu0
        %v650 = vadd.f32 0.0, %v649
        %v651 = vpop.f32.mrf.mxu0
        %v652 = vadd.f32 0.0, %v651
        %653 = vmatmul.bf16.gmra.mxu0 %v603
        %v654 = vpop.f32.mrf.mxu0
        %v655 = vadd.f32 0.0, %v654
        %v656 = vpop.f32.mrf.mxu0
        %657 = vdwg.mxu0
        %v663 = vunpack.c.l.b16 %v532
        %v664 = vunpack.c.h.b16 %v532
        %v665 = vunpack.c.l.b16 %v533
        %v666 = vunpack.c.h.b16 %v533
        %v667 = vunpack.c.l.b16 %v534
        %v668 = vunpack.c.h.b16 %v534
        %v669 = vunpack.c.l.b16 %v535
        %v670 = vunpack.c.h.b16 %v535
        %v671 = vunpack.c.l.b16 %v536
        %v672 = vunpack.c.h.b16 %v536
        %v673 = vpack.c.b16 %v665, %v663
        %v674 = vpack.c.b16 %v666, %v664
        %v675 = vpack.c.b16 %v669, %v667
        %v676 = vpack.c.b16 %v670, %v668
        %v677 = vpack.c.b16 %v671, %v671
        %v678 = vpack.c.b16 %v672, %v672
        %v683 = vsel %vm595, %v537, 0
        %v685 = vsel %vm595, %v538, 0
        %v687 = vsel %vm595, %v539, 0
        %v690 = vsel %vm605, %v677, 0
        %v693 = vsel %vm605, %v678, 0
        %695 = vmatpush.bf16.msra.mxu0 0
        %696 = vmatpush.bf16.msra.mxu0 0
        %697 = vmatpush.bf16.msra.mxu0 0
        %698 = vmatpush.bf16.msra.mxu0 0
        %699 = vmatpush.bf16.msra.mxu0 0
        %700 = vmatpush.bf16.msra.mxu0 %v690
        %701 = vmatpush.bf16.msra.mxu0 %v675
        %702 = vmatpush.bf16.msra.mxu0 %v673
        %703 = vmatmul.bf16.gmra.mxu0 %v683
        %v704 = vpop.f32.mrf.mxu0
        %v705 = vadd.f32 %v622, %v704
        %v706 = vpop.f32.mrf.mxu0
        %v707 = vadd.f32 %v624, %v706
        %708 = vmatmul.bf16.gmra.mxu0 %v685
        %v709 = vpop.f32.mrf.mxu0
        %v710 = vadd.f32 %v627, %v709
        %v711 = vpop.f32.mrf.mxu0
        %v712 = vadd.f32 %v629, %v711
        %713 = vmatmul.bf16.gmra.mxu0 %v687
        %v714 = vpop.f32.mrf.mxu0
        %v715 = vadd.f32 %v632, %v714
        %v716 = vpop.f32.mrf.mxu0
        %717 = vdwg.mxu0
        %718 = vmatpush.bf16.msra.mxu0 0
        %719 = vmatpush.bf16.msra.mxu0 0
        %720 = vmatpush.bf16.msra.mxu0 0
        %721 = vmatpush.bf16.msra.mxu0 0
        %722 = vmatpush.bf16.msra.mxu0 0
        %723 = vmatpush.bf16.msra.mxu0 %v693
        %724 = vmatpush.bf16.msra.mxu0 %v676
        %725 = vmatpush.bf16.msra.mxu0 %v674
        %726 = vmatmul.bf16.gmra.mxu0 %v683
        %v727 = vpop.f32.mrf.mxu0
        %v728 = vadd.f32 %v645, %v727
        %v729 = vpop.f32.mrf.mxu0
        %v730 = vadd.f32 %v647, %v729
        %731 = vmatmul.bf16.gmra.mxu0 %v685
        %v732 = vpop.f32.mrf.mxu0
        %v733 = vadd.f32 %v650, %v732
        %v734 = vpop.f32.mrf.mxu0
        %v735 = vadd.f32 %v652, %v734
        %736 = vmatmul.bf16.gmra.mxu0 %v687
        %v737 = vpop.f32.mrf.mxu0
        %v738 = vadd.f32 %v655, %v737
        %v739 = vpop.f32.mrf.mxu0
        %740 = vdwg.mxu0
        %s741 = scalar_lea.vmem %s1, 80
        %v742 = vld [vmem:[%s741] sm:$0xff]
        %v743 = vld [vmem:[%s741 + $0x8] sm:$0xff]
        %v744 = vld [vmem:[%s741 + $0x10] sm:$0xff]
        %v745 = vld [vmem:[%s741 + $0x18] sm:$0xff]
        %v746 = vld [vmem:[%s741 + $0x20] sm:$0x77]
        %vm750 = vcmask 1046528
        %v751 = vrot.slane %v537, 1
        %v752 = vrot.slane %v538, 1
        %v753 = vsel %vm750, %v751, %v752
        %v754 = vrot.slane %v539, 1
        %v755 = vsel %vm750, %v752, %v754
        %v761 = vunpack.c.l.b16 %v742
        %v762 = vunpack.c.h.b16 %v742
        %v763 = vunpack.c.l.b16 %v743
        %v764 = vunpack.c.h.b16 %v743
        %v765 = vunpack.c.l.b16 %v744
        %v766 = vunpack.c.h.b16 %v744
        %v767 = vunpack.c.l.b16 %v745
        %v768 = vunpack.c.h.b16 %v745
        %v769 = vunpack.c.l.b16 %v746
        %v770 = vunpack.c.h.b16 %v746
        %v771 = vpack.c.b16 %v763, %v761
        %v772 = vpack.c.b16 %v764, %v762
        %v773 = vpack.c.b16 %v767, %v765
        %v774 = vpack.c.b16 %v768, %v766
        %v775 = vpack.c.b16 %v769, %v769
        %v776 = vpack.c.b16 %v770, %v770
        %v782 = vsel %vm595, %v753, 0
        %v785 = vsel %vm595, %v755, 0
        %v788 = vsel %vm595, %v754, 0
        %v791 = vsel %vm605, %v775, 0
        %v794 = vsel %vm605, %v776, 0
        %796 = vmatpush.bf16.msra.mxu0 0
        %797 = vmatpush.bf16.msra.mxu0 0
        %798 = vmatpush.bf16.msra.mxu0 0
        %799 = vmatpush.bf16.msra.mxu0 0
        %800 = vmatpush.bf16.msra.mxu0 0
        %801 = vmatpush.bf16.msra.mxu0 %v791
        %802 = vmatpush.bf16.msra.mxu0 %v773
        %803 = vmatpush.bf16.msra.mxu0 %v771
        %804 = vmatmul.bf16.gmra.mxu0 %v782
        %v805 = vpop.f32.mrf.mxu0
        %v806 = vadd.f32 0.0, %v805
        %v807 = vpop.f32.mrf.mxu0
        %v808 = vadd.f32 0.0, %v807
        %809 = vmatmul.bf16.gmra.mxu0 %v785
        %v810 = vpop.f32.mrf.mxu0
        %v811 = vadd.f32 0.0, %v810
        %v812 = vpop.f32.mrf.mxu0
        %v813 = vadd.f32 0.0, %v812
        %814 = vmatmul.bf16.gmra.mxu0 %v788
        %v815 = vpop.f32.mrf.mxu0
        %v816 = vadd.f32 0.0, %v815
        %v817 = vpop.f32.mrf.mxu0
        %818 = vdwg.mxu0
        %819 = vmatpush.bf16.msra.mxu0 0
        %820 = vmatpush.bf16.msra.mxu0 0
        %821 = vmatpush.bf16.msra.mxu0 0
        %822 = vmatpush.bf16.msra.mxu0 0
        %823 = vmatpush.bf16.msra.mxu0 0
        %824 = vmatpush.bf16.msra.mxu0 %v794
        %825 = vmatpush.bf16.msra.mxu0 %v774
        %826 = vmatpush.bf16.msra.mxu0 %v772
        %827 = vmatmul.bf16.gmra.mxu0 %v782
        %v828 = vpop.f32.mrf.mxu0
        %v829 = vadd.f32 0.0, %v828
        %v830 = vpop.f32.mrf.mxu0
        %v831 = vadd.f32 0.0, %v830
        %832 = vmatmul.bf16.gmra.mxu0 %v785
        %v833 = vpop.f32.mrf.mxu0
        %v834 = vadd.f32 0.0, %v833
        %v835 = vpop.f32.mrf.mxu0
        %v836 = vadd.f32 0.0, %v835
        %837 = vmatmul.bf16.gmra.mxu0 %v788
        %v838 = vpop.f32.mrf.mxu0
        %v839 = vadd.f32 0.0, %v838
        %v840 = vpop.f32.mrf.mxu0
        %841 = vdwg.mxu0
        %v842 = vadd.f32 %v705, %v806
        %v843 = vadd.f32 %v728, %v829
        %v844 = vadd.f32 %v707, %v808
        %v845 = vadd.f32 %v730, %v831
        %v846 = vadd.f32 %v710, %v811
        %v847 = vadd.f32 %v733, %v834
        %v848 = vadd.f32 %v712, %v813
        %v849 = vadd.f32 %v735, %v836
        %v850 = vadd.f32 %v715, %v816
        %v851 = vadd.f32 %v738, %v839
        %s852 = scalar_lea.vmem %s1, 120
        %v853 = vld [vmem:[%s852] sm:$0xff]
        %v854 = vld [vmem:[%s852 + $0x8] sm:$0xff]
        %v855 = vld [vmem:[%s852 + $0x10] sm:$0xff]
        %v856 = vld [vmem:[%s852 + $0x18] sm:$0xff]
        %v857 = vld [vmem:[%s852 + $0x20] sm:$0x77]
        %vm858 = vsmask.f32 6400
        %v859 = vrot.slane %v548, 1
        %v860 = vrot.slane %v550, 2
        %v861 = vor.u32 %v859, %v860
        %v862 = vrot.slane %v559, 1
        %v863 = vrot.slane %v555, 2
        %v864 = vor.u32 %v862, %v863
        %v865 = vsel %vm858, %v861, %v864
        %v866 = vrot.slane %v567, 1
        %v867 = vrot.slane %v563, 2
        %v868 = vor.u32 %v866, %v867
        %v869 = vsel %vm858, %v864, %v868
        %v875 = vunpack.c.l.b16 %v853
        %v876 = vunpack.c.h.b16 %v853
        %v877 = vunpack.c.l.b16 %v854
        %v878 = vunpack.c.h.b16 %v854
        %v879 = vunpack.c.l.b16 %v855
        %v880 = vunpack.c.h.b16 %v855
        %v881 = vunpack.c.l.b16 %v856
        %v882 = vunpack.c.h.b16 %v856
        %v883 = vunpack.c.l.b16 %v857
        %v884 = vunpack.c.h.b16 %v857
        %v885 = vpack.c.b16 %v877, %v875
        %v886 = vpack.c.b16 %v878, %v876
        %v887 = vpack.c.b16 %v881, %v879
        %v888 = vpack.c.b16 %v882, %v880
        %v889 = vpack.c.b16 %v883, %v883
        %v890 = vpack.c.b16 %v884, %v884
        %v896 = vsel %vm595, %v865, 0
        %v899 = vsel %vm595, %v869, 0
        %v902 = vsel %vm595, %v868, 0
        %v905 = vsel %vm605, %v889, 0
        %v908 = vsel %vm605, %v890, 0
        %910 = vmatpush.bf16.msra.mxu0 0
        %911 = vmatpush.bf16.msra.mxu0 0
        %912 = vmatpush.bf16.msra.mxu0 0
        %913 = vmatpush.bf16.msra.mxu0 0
        %914 = vmatpush.bf16.msra.mxu0 0
        %915 = vmatpush.bf16.msra.mxu0 %v905
        %916 = vmatpush.bf16.msra.mxu0 %v887
        %917 = vmatpush.bf16.msra.mxu0 %v885
        %918 = vmatmul.bf16.gmra.mxu0 %v896
        %v919 = vpop.f32.mrf.mxu0
        %v920 = vadd.f32 0.0, %v919
        %v921 = vpop.f32.mrf.mxu0
        %v922 = vadd.f32 0.0, %v921
        %923 = vmatmul.bf16.gmra.mxu0 %v899
        %v924 = vpop.f32.mrf.mxu0
        %v925 = vadd.f32 0.0, %v924
        %v926 = vpop.f32.mrf.mxu0
        %v927 = vadd.f32 0.0, %v926
        %928 = vmatmul.bf16.gmra.mxu0 %v902
        %v929 = vpop.f32.mrf.mxu0
        %v930 = vadd.f32 0.0, %v929
        %v931 = vpop.f32.mrf.mxu0
        %932 = vdwg.mxu0
        %933 = vmatpush.bf16.msra.mxu0 0
        %934 = vmatpush.bf16.msra.mxu0 0
        %935 = vmatpush.bf16.msra.mxu0 0
        %936 = vmatpush.bf16.msra.mxu0 0
        %937 = vmatpush.bf16.msra.mxu0 0
        %938 = vmatpush.bf16.msra.mxu0 %v908
        %939 = vmatpush.bf16.msra.mxu0 %v888
        %940 = vmatpush.bf16.msra.mxu0 %v886
        %941 = vmatmul.bf16.gmra.mxu0 %v896
        %v942 = vpop.f32.mrf.mxu0
        %v943 = vadd.f32 0.0, %v942
        %v944 = vpop.f32.mrf.mxu0
        %v945 = vadd.f32 0.0, %v944
        %946 = vmatmul.bf16.gmra.mxu0 %v899
        %v947 = vpop.f32.mrf.mxu0
        %v948 = vadd.f32 0.0, %v947
        %v949 = vpop.f32.mrf.mxu0
        %v950 = vadd.f32 0.0, %v949
        %951 = vmatmul.bf16.gmra.mxu0 %v902
        %v952 = vpop.f32.mrf.mxu0
        %v953 = vadd.f32 0.0, %v952
        %v954 = vpop.f32.mrf.mxu0
        %955 = vdwg.mxu0
        %v956 = vadd.f32 %v842, %v920
        %v957 = vadd.f32 %v843, %v943
        %v958 = vadd.f32 %v844, %v922
        %v959 = vadd.f32 %v845, %v945
        %v960 = vadd.f32 %v846, %v925
        %v961 = vadd.f32 %v847, %v948
        %v962 = vadd.f32 %v848, %v927
        %v963 = vadd.f32 %v849, %v950
        %v964 = vadd.f32 %v850, %v930
        %v965 = vadd.f32 %v851, %v953
        %s966 = scalar_lea.vmem %s1, 160
        %v967 = vld [vmem:[%s966] sm:$0xff]
        %v968 = vld [vmem:[%s966 + $0x8] sm:$0xff]
        %v969 = vld [vmem:[%s966 + $0x10] sm:$0xff]
        %v970 = vld [vmem:[%s966 + $0x18] sm:$0xff]
        %v971 = vld [vmem:[%s966 + $0x20] sm:$0x77]
        %vm972 = vcmask 1045504
        %v973 = vrot.slane %v537, 2
        %v974 = vrot.slane %v538, 2
        %v975 = vsel %vm972, %v973, %v974
        %v976 = vrot.slane %v539, 2
        %v977 = vsel %vm972, %v974, %v976
        %v983 = vunpack.c.l.b16 %v967
        %v984 = vunpack.c.h.b16 %v967
        %v985 = vunpack.c.l.b16 %v968
        %v986 = vunpack.c.h.b16 %v968
        %v987 = vunpack.c.l.b16 %v969
        %v988 = vunpack.c.h.b16 %v969
        %v989 = vunpack.c.l.b16 %v970
        %v990 = vunpack.c.h.b16 %v970
        %v991 = vunpack.c.l.b16 %v971
        %v992 = vunpack.c.h.b16 %v971
        %v993 = vpack.c.b16 %v985, %v983
        %v994 = vpack.c.b16 %v986, %v984
        %v995 = vpack.c.b16 %v989, %v987
        %v996 = vpack.c.b16 %v990, %v988
        %v997 = vpack.c.b16 %v991, %v991
        %v998 = vpack.c.b16 %v992, %v992
        %v1004 = vsel %vm595, %v975, 0
        %v1007 = vsel %vm595, %v977, 0
        %v1010 = vsel %vm595, %v976, 0
        %v1013 = vsel %vm605, %v997, 0
        %v1016 = vsel %vm605, %v998, 0
        %1018 = vmatpush.bf16.msra.mxu0 0
        %1019 = vmatpush.bf16.msra.mxu0 0
        %1020 = vmatpush.bf16.msra.mxu0 0
        %1021 = vmatpush.bf16.msra.mxu0 0
        %1022 = vmatpush.bf16.msra.mxu0 0
        %1023 = vmatpush.bf16.msra.mxu0 %v1013
        %1024 = vmatpush.bf16.msra.mxu0 %v995
        %1025 = vmatpush.bf16.msra.mxu0 %v993
        %1026 = vmatmul.bf16.gmra.mxu0 %v1004
        %v1027 = vpop.f32.mrf.mxu0
        %v1028 = vadd.f32 0.0, %v1027
        %v1029 = vpop.f32.mrf.mxu0
        %v1030 = vadd.f32 0.0, %v1029
        %1031 = vmatmul.bf16.gmra.mxu0 %v1007
        %v1032 = vpop.f32.mrf.mxu0
        %v1033 = vadd.f32 0.0, %v1032
        %v1034 = vpop.f32.mrf.mxu0
        %v1035 = vadd.f32 0.0, %v1034
        %1036 = vmatmul.bf16.gmra.mxu0 %v1010
        %v1037 = vpop.f32.mrf.mxu0
        %v1038 = vadd.f32 0.0, %v1037
        %v1039 = vpop.f32.mrf.mxu0
        %1040 = vdwg.mxu0
        %1041 = vmatpush.bf16.msra.mxu0 0
        %1042 = vmatpush.bf16.msra.mxu0 0
        %1043 = vmatpush.bf16.msra.mxu0 0
        %1044 = vmatpush.bf16.msra.mxu0 0
        %1045 = vmatpush.bf16.msra.mxu0 0
        %1046 = vmatpush.bf16.msra.mxu0 %v1016
        %1047 = vmatpush.bf16.msra.mxu0 %v996
        %1048 = vmatpush.bf16.msra.mxu0 %v994
        %1049 = vmatmul.bf16.gmra.mxu0 %v1004
        %v1050 = vpop.f32.mrf.mxu0
        %v1051 = vadd.f32 0.0, %v1050
        %v1052 = vpop.f32.mrf.mxu0
        %v1053 = vadd.f32 0.0, %v1052
        %1054 = vmatmul.bf16.gmra.mxu0 %v1007
        %v1055 = vpop.f32.mrf.mxu0
        %v1056 = vadd.f32 0.0, %v1055
        %v1057 = vpop.f32.mrf.mxu0
        %v1058 = vadd.f32 0.0, %v1057
        %1059 = vmatmul.bf16.gmra.mxu0 %v1010
        %v1060 = vpop.f32.mrf.mxu0
        %v1061 = vadd.f32 0.0, %v1060
        %v1062 = vpop.f32.mrf.mxu0
        %1063 = vdwg.mxu0
        %v1064 = vadd.f32 %v956, %v1028
        %v1065 = vadd.f32 %v957, %v1051
        %v1066 = vadd.f32 %v958, %v1030
        %v1067 = vadd.f32 %v959, %v1053
        %v1068 = vadd.f32 %v960, %v1033
        %v1069 = vadd.f32 %v961, %v1056
        %v1070 = vadd.f32 %v962, %v1035
        %v1071 = vadd.f32 %v963, %v1058
        %v1072 = vadd.f32 %v964, %v1038
        %v1073 = vadd.f32 %v965, %v1061
        %v1074 = vld [vmem:[%s2] sm:$0x3]
        %v1076 = vperm.slane %v1074, 0
        %v1077 = vperm.slane %v1074, 1
        %v1080 = vadd.f32 %v1064, %v1076
        %v1081 = vadd.f32 %v1065, %v1077
        %v1082 = vadd.f32 %v1066, %v1076
        %v1083 = vadd.f32 %v1067, %v1077
        %v1084 = vadd.f32 %v1068, %v1076
        %v1085 = vadd.f32 %v1069, %v1077
        %v1086 = vadd.f32 %v1070, %v1076
        %v1087 = vadd.f32 %v1071, %v1077
        %v1088 = vadd.f32 %v1072, %v1076
        %v1089 = vadd.f32 %v1073, %v1077
        %v1090 = vmax.f32 %v1080, 0.0
        %v1091 = vmax.f32 %v1081, 0.0
        %v1092 = vmax.f32 %v1082, 0.0
        %v1093 = vmax.f32 %v1083, 0.0
        %v1094 = vmax.f32 %v1084, 0.0
        %v1095 = vmax.f32 %v1085, 0.0
        %v1096 = vmax.f32 %v1086, 0.0
        %v1097 = vmax.f32 %v1087, 0.0
        %v1098 = vmax.f32 %v1088, 0.0
        %v1099 = vmax.f32 %v1089, 0.0
        %1110 = vrot.lane.b32.xlu0 %v1090, 127
        %v1111 = vpop.permute.xlu0 %1110
        %1112 = vrot.lane.b32.xlu0 %v1091, 127
        %v1113 = vpop.permute.xlu0 %1112
        %1114 = vrot.lane.b32.xlu0 %v1092, 127
        %v1115 = vpop.permute.xlu0 %1114
        %1116 = vrot.lane.b32.xlu0 %v1093, 127
        %v1117 = vpop.permute.xlu0 %1116
        %1118 = vrot.lane.b32.xlu0 %v1094, 127
        %v1119 = vpop.permute.xlu0 %1118
        %1120 = vrot.lane.b32.xlu0 %v1095, 127
        %v1121 = vpop.permute.xlu0 %1120
        %1122 = vrot.lane.b32.xlu0 %v1096, 127
        %v1123 = vpop.permute.xlu0 %1122
        %1124 = vrot.lane.b32.xlu0 %v1097, 127
        %v1125 = vpop.permute.xlu0 %1124
        %1126 = vrot.lane.b32.xlu0 %v1098, 127
        %v1127 = vpop.permute.xlu0 %1126
        %1128 = vrot.lane.b32.xlu0 %v1099, 127
        %v1129 = vpop.permute.xlu0 %1128
        %vm1130 = vcmask 1039360
        %v1131 = vsel %vm1130, %v1111, %v1113
        %v1132 = vsel %vm1130, %v1115, %v1117
        %v1133 = vsel %vm1130, %v1119, %v1121
        %v1134 = vsel %vm1130, %v1123, %v1125
        %v1135 = vsel %vm1130, %v1127, %v1129
        %v1146 = vmax.f32 %v1090, %v1131
        %v1147 = vmax.f32 %v1091, %v1113
        %v1148 = vmax.f32 %v1092, %v1132
        %v1149 = vmax.f32 %v1093, %v1117
        %v1150 = vmax.f32 %v1094, %v1133
        %v1151 = vmax.f32 %v1095, %v1121
        %v1152 = vmax.f32 %v1096, %v1134
        %v1153 = vmax.f32 %v1097, %v1125
        %v1154 = vmax.f32 %v1098, %v1135
        %v1155 = vmax.f32 %v1099, %v1129
        %1166 = vrot.lane.b32.xlu0 %v1146, 126
        %v1167 = vpop.permute.xlu0 %1166
        %1168 = vrot.lane.b32.xlu0 %v1147, 126
        %v1169 = vpop.permute.xlu0 %1168
        %1170 = vrot.lane.b32.xlu0 %v1148, 126
        %v1171 = vpop.permute.xlu0 %1170
        %1172 = vrot.lane.b32.xlu0 %v1149, 126
        %v1173 = vpop.permute.xlu0 %1172
        %1174 = vrot.lane.b32.xlu0 %v1150, 126
        %v1175 = vpop.permute.xlu0 %1174
        %1176 = vrot.lane.b32.xlu0 %v1151, 126
        %v1177 = vpop.permute.xlu0 %1176
        %1178 = vrot.lane.b32.xlu0 %v1152, 126
        %v1179 = vpop.permute.xlu0 %1178
        %1180 = vrot.lane.b32.xlu0 %v1153, 126
        %v1181 = vpop.permute.xlu0 %1180
        %1182 = vrot.lane.b32.xlu0 %v1154, 126
        %v1183 = vpop.permute.xlu0 %1182
        %1184 = vrot.lane.b32.xlu0 %v1155, 126
        %v1185 = vpop.permute.xlu0 %1184
        %vm1186 = vcmask 1031168
        %v1187 = vsel %vm1186, %v1167, %v1169
        %v1188 = vsel %vm1186, %v1171, %v1173
        %v1189 = vsel %vm1186, %v1175, %v1177
        %v1190 = vsel %vm1186, %v1179, %v1181
        %v1191 = vsel %vm1186, %v1183, %v1185
        %v1202 = vmax.f32 %v1146, %v1187
        %v1203 = vmax.f32 %v1147, %v1169
        %v1204 = vmax.f32 %v1148, %v1188
        %v1205 = vmax.f32 %v1149, %v1173
        %v1206 = vmax.f32 %v1150, %v1189
        %v1207 = vmax.f32 %v1151, %v1177
        %v1208 = vmax.f32 %v1152, %v1190
        %v1209 = vmax.f32 %v1153, %v1181
        %v1210 = vmax.f32 %v1154, %v1191
        %v1211 = vmax.f32 %v1155, %v1185
        %v1212 = vld [vmem:[%s3] sm:$0xf]
        %v1213 = vld [vmem:[%s3 + $0x4] sm:$0xf]
        %v1214 = vld [vmem:[%s3 + $0x8] sm:$0xf]
        %v1215 = vld [vmem:[%s3 + $0xc] sm:$0xf]
        %v1216 = vld [vmem:[%s3 + $0x10] sm:$0xf]
        %v1217 = vld [vmem:[%s3 + $0x14] sm:$0xf]
        %v1218 = vld [vmem:[%s3 + $0x18] sm:$0xf]
        %v1219 = vld [vmem:[%s3 + $0x1c] sm:$0xf]
        %v1220 = vld [vmem:[%s3 + $0x20] sm:$0xf]
        %v1221 = vld [vmem:[%s3 + $0x24] sm:$0xf]
        %v1222 = vld [vmem:[%s3 + $0x28] sm:$0xf]
        %v1223 = vld [vmem:[%s3 + $0x2c] sm:$0xf]
        %v1224 = vld [vmem:[%s3 + $0x30] sm:$0xf]
        %v1225 = vld [vmem:[%s3 + $0x34] sm:$0xf]
        %v1226 = vld [vmem:[%s3 + $0x38] sm:$0xf]
        %v1227 = vld [vmem:[%s3 + $0x3c] sm:$0xf]
        %v1228 = vld [vmem:[%s3 + $0x40] sm:$0xf]
        %v1229 = vld [vmem:[%s3 + $0x44] sm:$0xf]
        %v1230 = vld [vmem:[%s3 + $0x48] sm:$0xf]
        %v1231 = vld [vmem:[%s3 + $0x4c] sm:$0xf]
        %v1232 = vld [vmem:[%s3 + $0x50] sm:$0xf]
        %v1233 = vld [vmem:[%s3 + $0x54] sm:$0xf]
        %v1234 = vld [vmem:[%s3 + $0x58] sm:$0xf]
        %v1235 = vld [vmem:[%s3 + $0x5c] sm:$0xf]
        %v1236 = vld [vmem:[%s3 + $0x60] sm:$0xf]
        %v1237 = vld [vmem:[%s3 + $0x64] sm:$0x1]
        %v1238 = vpack.c.bf16 %v1204, %v1202
        %v1239 = vpack.c.bf16 %v1205, %v1203
        %v1240 = vpack.c.bf16 %v1208, %v1206
        %v1241 = vpack.c.bf16 %v1209, %v1207
        %v1242 = vpack.c.bf16 %v1210, %v1210
        %v1243 = vpack.c.bf16 %v1211, %v1211
        %v1270 = vunpack.c.l.b16 %v1212
        %v1271 = vunpack.c.l.b16 %v1213
        %v1272 = vunpack.c.l.b16 %v1214
        %v1273 = vunpack.c.l.b16 %v1215
        %v1274 = vunpack.c.l.b16 %v1216
        %v1275 = vunpack.c.l.b16 %v1217
        %v1276 = vunpack.c.l.b16 %v1218
        %v1277 = vunpack.c.l.b16 %v1219
        %v1278 = vunpack.c.l.b16 %v1220
        %v1279 = vunpack.c.l.b16 %v1221
        %v1280 = vunpack.c.l.b16 %v1222
        %v1281 = vunpack.c.l.b16 %v1223
        %v1282 = vunpack.c.l.b16 %v1224
        %v1283 = vunpack.c.l.b16 %v1225
        %v1284 = vunpack.c.l.b16 %v1226
        %v1285 = vunpack.c.l.b16 %v1227
        %v1286 = vunpack.c.l.b16 %v1228
        %v1287 = vunpack.c.l.b16 %v1229
        %v1288 = vunpack.c.l.b16 %v1230
        %v1289 = vunpack.c.l.b16 %v1231
        %v1290 = vunpack.c.l.b16 %v1232
        %v1291 = vunpack.c.l.b16 %v1233
        %v1292 = vunpack.c.l.b16 %v1234
        %v1293 = vunpack.c.l.b16 %v1235
        %v1294 = vunpack.c.l.b16 %v1236
        %v1295 = vunpack.c.l.b16 %v1237
        %v1296 = vpack.c.b16 %v1271, %v1270
        %v1297 = vpack.c.b16 %v1273, %v1272
        %v1298 = vpack.c.b16 %v1275, %v1274
        %v1299 = vpack.c.b16 %v1277, %v1276
        %v1300 = vpack.c.b16 %v1279, %v1278
        %v1301 = vpack.c.b16 %v1281, %v1280
        %v1302 = vpack.c.b16 %v1283, %v1282
        %v1303 = vpack.c.b16 %v1285, %v1284
        %v1304 = vpack.c.b16 %v1287, %v1286
        %v1305 = vpack.c.b16 %v1289, %v1288
        %v1306 = vpack.c.b16 %v1291, %v1290
        %v1307 = vpack.c.b16 %v1293, %v1292
        %v1308 = vpack.c.b16 %v1295, %v1294
        %vm1321 = vcmask 596992
        %v1323 = vsel %vm1321, %v1239, 0
        %v1326 = vsel %vm1321, %v1241, 0
        %v1329 = vsel %vm1321, %v1243, 0
        %vm1331 = vcmask 1043456
        %vm1332 = vcmask 1044480
        %v1333 = vsel %vm1331, 4294967295, 65535
        %v1334 = vsel %vm1332, %v1333, 0
        %v1336 = vand.u32 %v1308, %v1334
        %1338 = vmatpush.bf16.msra.mxu0 %v1303
        %1339 = vmatpush.bf16.msra.mxu0 %v1302
        %1340 = vmatpush.bf16.msra.mxu0 %v1301
        %1341 = vmatpush.bf16.msra.mxu0 %v1300
        %1342 = vmatpush.bf16.msra.mxu0 %v1299
        %1343 = vmatpush.bf16.msra.mxu0 %v1298
        %1344 = vmatpush.bf16.msra.mxu0 %v1297
        %1345 = vmatpush.bf16.msra.mxu0 %v1296
        %1346 = vmatmul.bf16.gmra.mxu0 %v1238
        %v1347 = vpop.f32.mrf.mxu0
        %v1348 = vadd.f32 0.0, %v1347
        %v1349 = vpop.f32.mrf.mxu0
        %v1350 = vadd.f32 0.0, %v1349
        %1351 = vmatmul.bf16.gmra.mxu0 %v1240
        %v1352 = vpop.f32.mrf.mxu0
        %v1353 = vadd.f32 0.0, %v1352
        %v1354 = vpop.f32.mrf.mxu0
        %v1355 = vadd.f32 0.0, %v1354
        %1356 = vmatmul.bf16.gmra.mxu0 %v1242
        %v1357 = vpop.f32.mrf.mxu0
        %v1358 = vadd.f32 0.0, %v1357
        %v1359 = vpop.f32.mrf.mxu0
        %1360 = vdwg.mxu0
        %1361 = vmatpush.bf16.msra.mxu0 0
        %1362 = vmatpush.bf16.msra.mxu0 0
        %1363 = vmatpush.bf16.msra.mxu0 0
        %1364 = vmatpush.bf16.msra.mxu0 %v1336
        %1365 = vmatpush.bf16.msra.mxu0 %v1307
        %1366 = vmatpush.bf16.msra.mxu0 %v1306
        %1367 = vmatpush.bf16.msra.mxu0 %v1305
        %1368 = vmatpush.bf16.msra.mxu0 %v1304
        %1369 = vmatmul.bf16.gmra.mxu0 %v1323
        %v1370 = vpop.f32.mrf.mxu0
        %v1371 = vadd.f32 %v1348, %v1370
        %v1372 = vpop.f32.mrf.mxu0
        %v1373 = vadd.f32 %v1350, %v1372
        %1374 = vmatmul.bf16.gmra.mxu0 %v1326
        %v1375 = vpop.f32.mrf.mxu0
        %v1376 = vadd.f32 %v1353, %v1375
        %v1377 = vpop.f32.mrf.mxu0
        %v1378 = vadd.f32 %v1355, %v1377
        %1379 = vmatmul.bf16.gmra.mxu0 %v1329
        %v1380 = vpop.f32.mrf.mxu0
        %v1381 = vadd.f32 %v1358, %v1380
        %v1382 = vpop.f32.mrf.mxu0
        %1383 = vdwg.mxu0
        %vm1389 = vcmask 1046528
        %v1390 = vrot.slane %v1371, 1
        %v1391 = vrot.slane %v1373, 1
        %v1392 = vsel %vm1389, %v1390, %v1391
        %v1393 = vrot.slane %v1376, 1
        %v1394 = vsel %vm1389, %v1391, %v1393
        %v1395 = vrot.slane %v1378, 1
        %v1396 = vsel %vm1389, %v1393, %v1395
        %v1397 = vrot.slane %v1381, 1
        %v1398 = vsel %vm1389, %v1395, %v1397
        %v1404 = vmax.f32 %v1371, %v1392
        %v1405 = vmax.f32 %v1373, %v1394
        %v1406 = vmax.f32 %v1376, %v1396
        %v1407 = vmax.f32 %v1378, %v1398
        %v1408 = vmax.f32 %v1381, %v1397
        %vm1414 = vcmask 1045504
        %v1415 = vrot.slane %v1404, 2
        %v1416 = vrot.slane %v1405, 2
        %v1417 = vsel %vm1414, %v1415, %v1416
        %v1418 = vrot.slane %v1406, 2
        %v1419 = vsel %vm1414, %v1416, %v1418
        %v1420 = vrot.slane %v1407, 2
        %v1421 = vsel %vm1414, %v1418, %v1420
        %v1422 = vrot.slane %v1408, 2
        %v1423 = vsel %vm1414, %v1420, %v1422
        %v1428 = vmax.f32 %v1404, %v1417
        %v1429 = vmax.f32 %v1405, %v1419
        %v1430 = vmax.f32 %v1406, %v1421
        %v1431 = vmax.f32 %v1407, %v1423
        %v1432 = vld [vmem:[%s4] sm:$0xf]
        %v1433 = vld [vmem:[%s4 + $0x4] sm:$0xf]
        %v1434 = vpack.c.bf16 %v1429, %v1428
        %v1435 = vpack.c.bf16 %v1431, %v1430
        %v1438 = vunpack.c.l.b16 %v1432
        %v1439 = vunpack.c.l.b16 %v1433
        %v1440 = vpack.c.b16 %v1439, %v1438
        %vm1441 = vcmask 252928
        %v1443 = vsel %vm1441, %v1440, 0
        %vm1445 = vcmask 1047552
        %v1446 = vsel %vm1389, 4294967295, 65535
        %v1447 = vsel %vm1445, %v1446, 0
        %v1449 = vand.u32 %v1435, %v1447
        %1451 = vmatpush.bf16.msra.mxu0 0
        %1452 = vmatpush.bf16.msra.mxu0 0
        %1453 = vmatpush.bf16.msra.mxu0 0
        %1454 = vmatpush.bf16.msra.mxu0 0
        %1455 = vmatpush.bf16.msra.mxu0 0
        %1456 = vmatpush.bf16.msra.mxu0 0
        %1457 = vmatpush.bf16.msra.mxu0 %v1449
        %1458 = vmatpush.bf16.msra.mxu0 %v1434
        %1459 = vmatmul.bf16.gmra.mxu0 %v1443
        %v1460 = vpop.f32.mrf.mxu0
        %v1461 = vadd.f32 0.0, %v1460
        %v1462 = vpop.f32.mrf.mxu0
        %v1463 = vadd.f32 0.0, %v1462
        %1464 = vdwg.mxu0
        %v1465 = vld [vmem:[#allocation2] sm:$0xff]
        %v1466 = vld [vmem:[#allocation2 + $0x8] sm:$0xff]
        %v1467 = vld [vmem:[#allocation2 + $0x10] sm:$0xff]
        %v1468 = vld [vmem:[#allocation2 + $0x18] sm:$0xff]
        %v1469 = vld [vmem:[#allocation2 + $0x20] sm:$0xff]
        %v1470 = vld [vmem:[#allocation2 + $0x28] sm:$0xff]
        %v1471 = vld [vmem:[#allocation2 + $0x30] sm:$0xff]
        %v1472 = vld [vmem:[#allocation2 + $0x38] sm:$0xff]
        %v1473 = vld [vmem:[#allocation2 + $0x40] sm:$0xff]
        %v1474 = vld [vmem:[#allocation2 + $0x48] sm:$0xff]
        %v1475 = vld [vmem:[#allocation2 + $0x50] sm:$0xff]
        %v1476 = vld [vmem:[#allocation2 + $0x58] sm:$0xff]
        %v1477 = vpack.c.bf16 %v1463, %v1461
        %s1478 = scalar_lea.vmem [#allocation2], 96
        %v1479 = vld [vmem:[%s1478] sm:$0xff]
        %v1480 = vld [vmem:[%s1478 + $0x8] sm:$0xff]
        %v1481 = vld [vmem:[%s1478 + $0x10] sm:$0xff]
        %v1482 = vld [vmem:[%s1478 + $0x18] sm:$0xff]
        %v1483 = vld [vmem:[%s1478 + $0x20] sm:$0xff]
        %v1484 = vld [vmem:[%s1478 + $0x28] sm:$0xff]
        %v1485 = vld [vmem:[%s1478 + $0x30] sm:$0xff]
        %v1486 = vld [vmem:[%s1478 + $0x38] sm:$0xff]
        %v1487 = vld [vmem:[%s1478 + $0x40] sm:$0xff]
        %v1488 = vld [vmem:[%s1478 + $0x48] sm:$0xff]
        %v1489 = vld [vmem:[%s1478 + $0x50] sm:$0xff]
        %v1490 = vld [vmem:[%s1478 + $0x58] sm:$0xff]
        %v1492 = vshrl.u32 %v1477, 16
        %v1494 = vshll.u32 %v1477, 16
        %v1496 = vrot.slane %v1494, 1
        %v1497 = vor.u32 %v1492, %v1496
        %v1510 = vunpack.c.l.b16 %v1479
        %v1511 = vunpack.c.h.b16 %v1479
        %v1512 = vunpack.c.l.b16 %v1480
        %v1513 = vunpack.c.h.b16 %v1480
        %v1514 = vunpack.c.l.b16 %v1481
        %v1515 = vunpack.c.h.b16 %v1481
        %v1516 = vunpack.c.l.b16 %v1482
        %v1517 = vunpack.c.h.b16 %v1482
        %v1518 = vunpack.c.l.b16 %v1483
        %v1519 = vunpack.c.h.b16 %v1483
        %v1520 = vunpack.c.l.b16 %v1484
        %v1521 = vunpack.c.h.b16 %v1484
        %v1522 = vunpack.c.l.b16 %v1485
        %v1523 = vunpack.c.h.b16 %v1485
        %v1524 = vunpack.c.l.b16 %v1486
        %v1525 = vunpack.c.h.b16 %v1486
        %v1526 = vunpack.c.l.b16 %v1487
        %v1527 = vunpack.c.h.b16 %v1487
        %v1528 = vunpack.c.l.b16 %v1488
        %v1529 = vunpack.c.h.b16 %v1488
        %v1530 = vunpack.c.l.b16 %v1489
        %v1531 = vunpack.c.h.b16 %v1489
        %v1532 = vunpack.c.l.b16 %v1490
        %v1533 = vunpack.c.h.b16 %v1490
        %v1534 = vpack.c.b16 %v1512, %v1510
        %v1535 = vpack.c.b16 %v1513, %v1511
        %v1536 = vpack.c.b16 %v1516, %v1514
        %v1537 = vpack.c.b16 %v1517, %v1515
        %v1538 = vpack.c.b16 %v1520, %v1518
        %v1539 = vpack.c.b16 %v1521, %v1519
        %v1540 = vpack.c.b16 %v1524, %v1522
        %v1541 = vpack.c.b16 %v1525, %v1523
        %v1542 = vpack.c.b16 %v1528, %v1526
        %v1543 = vpack.c.b16 %v1529, %v1527
        %v1544 = vpack.c.b16 %v1532, %v1530
        %v1545 = vpack.c.b16 %v1533, %v1531
        %vm1558 = vcmask 785408
        %v1560 = vsel %vm1558, %v1497, 0
        %1562 = vmatpush.bf16.msra.mxu0 0
        %1563 = vmatpush.bf16.msra.mxu0 0
        %1564 = vmatpush.bf16.msra.mxu0 %v1544
        %1565 = vmatpush.bf16.msra.mxu0 %v1542
        %1566 = vmatpush.bf16.msra.mxu0 %v1540
        %1567 = vmatpush.bf16.msra.mxu0 %v1538
        %1568 = vmatpush.bf16.msra.mxu0 %v1536
        %1569 = vmatpush.bf16.msra.mxu0 %v1534
        %1570 = vmatmul.bf16.gmra.mxu0 %v1560
        %v1571 = vpop.f32.mrf.mxu0
        %v1572 = vadd.f32 0.0, %v1571
        %v1573 = vpop.f32.mrf.mxu0
        %v1574 = vadd.f32 0.0, %v1573
        %1575 = vdwg.mxu0
        %1576 = vmatpush.bf16.msra.mxu0 0
        %1577 = vmatpush.bf16.msra.mxu0 0
        %1578 = vmatpush.bf16.msra.mxu0 %v1545
        %1579 = vmatpush.bf16.msra.mxu0 %v1543
        %1580 = vmatpush.bf16.msra.mxu0 %v1541
        %1581 = vmatpush.bf16.msra.mxu0 %v1539
        %1582 = vmatpush.bf16.msra.mxu0 %v1537
        %1583 = vmatpush.bf16.msra.mxu0 %v1535
        %1584 = vmatmul.bf16.gmra.mxu0 %v1560
        %v1585 = vpop.f32.mrf.mxu0
        %v1586 = vadd.f32 0.0, %v1585
        %v1587 = vpop.f32.mrf.mxu0
        %v1588 = vadd.f32 0.0, %v1587
        %1589 = vdwg.mxu0
        %v1602 = vunpack.c.l.b16 %v1465
        %v1603 = vunpack.c.h.b16 %v1465
        %v1604 = vunpack.c.l.b16 %v1466
        %v1605 = vunpack.c.h.b16 %v1466
        %v1606 = vunpack.c.l.b16 %v1467
        %v1607 = vunpack.c.h.b16 %v1467
        %v1608 = vunpack.c.l.b16 %v1468
        %v1609 = vunpack.c.h.b16 %v1468
        %v1610 = vunpack.c.l.b16 %v1469
        %v1611 = vunpack.c.h.b16 %v1469
        %v1612 = vunpack.c.l.b16 %v1470
        %v1613 = vunpack.c.h.b16 %v1470
        %v1614 = vunpack.c.l.b16 %v1471
        %v1615 = vunpack.c.h.b16 %v1471
        %v1616 = vunpack.c.l.b16 %v1472
        %v1617 = vunpack.c.h.b16 %v1472
        %v1618 = vunpack.c.l.b16 %v1473
        %v1619 = vunpack.c.h.b16 %v1473
        %v1620 = vunpack.c.l.b16 %v1474
        %v1621 = vunpack.c.h.b16 %v1474
        %v1622 = vunpack.c.l.b16 %v1475
        %v1623 = vunpack.c.h.b16 %v1475
        %v1624 = vunpack.c.l.b16 %v1476
        %v1625 = vunpack.c.h.b16 %v1476
        %v1626 = vpack.c.b16 %v1604, %v1602
        %v1627 = vpack.c.b16 %v1605, %v1603
        %v1628 = vpack.c.b16 %v1608, %v1606
        %v1629 = vpack.c.b16 %v1609, %v1607
        %v1630 = vpack.c.b16 %v1612, %v1610
        %v1631 = vpack.c.b16 %v1613, %v1611
        %v1632 = vpack.c.b16 %v1616, %v1614
        %v1633 = vpack.c.b16 %v1617, %v1615
        %v1634 = vpack.c.b16 %v1620, %v1618
        %v1635 = vpack.c.b16 %v1621, %v1619
        %v1636 = vpack.c.b16 %v1624, %v1622
        %v1637 = vpack.c.b16 %v1625, %v1623
        %v1650 = vsel %vm1558, %v1477, 0
        %1652 = vmatpush.bf16.msra.mxu0 0
        %1653 = vmatpush.bf16.msra.mxu0 0
        %1654 = vmatpush.bf16.msra.mxu0 %v1636
        %1655 = vmatpush.bf16.msra.mxu0 %v1634
        %1656 = vmatpush.bf16.msra.mxu0 %v1632
        %1657 = vmatpush.bf16.msra.mxu0 %v1630
        %1658 = vmatpush.bf16.msra.mxu0 %v1628
        %1659 = vmatpush.bf16.msra.mxu0 %v1626
        %1660 = vmatmul.bf16.gmra.mxu0 %v1650
        %v1661 = vpop.f32.mrf.mxu0
        %v1662 = vadd.f32 %v1572, %v1661
        %v1663 = vpop.f32.mrf.mxu0
        %v1664 = vadd.f32 %v1574, %v1663
        %1665 = vdwg.mxu0
        %1666 = vmatpush.bf16.msra.mxu0 0
        %1667 = vmatpush.bf16.msra.mxu0 0
        %1668 = vmatpush.bf16.msra.mxu0 %v1637
        %1669 = vmatpush.bf16.msra.mxu0 %v1635
        %1670 = vmatpush.bf16.msra.mxu0 %v1633
        %1671 = vmatpush.bf16.msra.mxu0 %v1631
        %1672 = vmatpush.bf16.msra.mxu0 %v1629
        %1673 = vmatpush.bf16.msra.mxu0 %v1627
        %1674 = vmatmul.bf16.gmra.mxu0 %v1650
        %v1675 = vpop.f32.mrf.mxu0
        %v1676 = vadd.f32 %v1586, %v1675
        %v1677 = vpop.f32.mrf.mxu0
        %v1678 = vadd.f32 %v1588, %v1677
        %1679 = vdwg.mxu0
        %s1680 = scalar_lea.vmem [#allocation2], 192
        %v1681 = vld [vmem:[%s1680] sm:$0xff]
        %v1682 = vld [vmem:[%s1680 + $0x8] sm:$0xff]
        %v1683 = vld [vmem:[%s1680 + $0x10] sm:$0xff]
        %v1684 = vld [vmem:[%s1680 + $0x18] sm:$0xff]
        %v1685 = vld [vmem:[%s1680 + $0x20] sm:$0xff]
        %v1686 = vld [vmem:[%s1680 + $0x28] sm:$0xff]
        %v1687 = vld [vmem:[%s1680 + $0x30] sm:$0xff]
        %v1688 = vld [vmem:[%s1680 + $0x38] sm:$0xff]
        %v1689 = vld [vmem:[%s1680 + $0x40] sm:$0xff]
        %v1690 = vld [vmem:[%s1680 + $0x48] sm:$0xff]
        %v1691 = vld [vmem:[%s1680 + $0x50] sm:$0xff]
        %v1692 = vld [vmem:[%s1680 + $0x58] sm:$0xff]
        %v1694 = vrot.slane %v1477, 1
        %v1707 = vunpack.c.l.b16 %v1681
        %v1708 = vunpack.c.h.b16 %v1681
        %v1709 = vunpack.c.l.b16 %v1682
        %v1710 = vunpack.c.h.b16 %v1682
        %v1711 = vunpack.c.l.b16 %v1683
        %v1712 = vunpack.c.h.b16 %v1683
        %v1713 = vunpack.c.l.b16 %v1684
        %v1714 = vunpack.c.h.b16 %v1684
        %v1715 = vunpack.c.l.b16 %v1685
        %v1716 = vunpack.c.h.b16 %v1685
        %v1717 = vunpack.c.l.b16 %v1686
        %v1718 = vunpack.c.h.b16 %v1686
        %v1719 = vunpack.c.l.b16 %v1687
        %v1720 = vunpack.c.h.b16 %v1687
        %v1721 = vunpack.c.l.b16 %v1688
        %v1722 = vunpack.c.h.b16 %v1688
        %v1723 = vunpack.c.l.b16 %v1689
        %v1724 = vunpack.c.h.b16 %v1689
        %v1725 = vunpack.c.l.b16 %v1690
        %v1726 = vunpack.c.h.b16 %v1690
        %v1727 = vunpack.c.l.b16 %v1691
        %v1728 = vunpack.c.h.b16 %v1691
        %v1729 = vunpack.c.l.b16 %v1692
        %v1730 = vunpack.c.h.b16 %v1692
        %v1731 = vpack.c.b16 %v1709, %v1707
        %v1732 = vpack.c.b16 %v1710, %v1708
        %v1733 = vpack.c.b16 %v1713, %v1711
        %v1734 = vpack.c.b16 %v1714, %v1712
        %v1735 = vpack.c.b16 %v1717, %v1715
        %v1736 = vpack.c.b16 %v1718, %v1716
        %v1737 = vpack.c.b16 %v1721, %v1719
        %v1738 = vpack.c.b16 %v1722, %v1720
        %v1739 = vpack.c.b16 %v1725, %v1723
        %v1740 = vpack.c.b16 %v1726, %v1724
        %v1741 = vpack.c.b16 %v1729, %v1727
        %v1742 = vpack.c.b16 %v1730, %v1728
        %v1756 = vsel %vm1558, %v1694, 0
        %1758 = vmatpush.bf16.msra.mxu0 0
        %1759 = vmatpush.bf16.msra.mxu0 0
        %1760 = vmatpush.bf16.msra.mxu0 %v1741
        %1761 = vmatpush.bf16.msra.mxu0 %v1739
        %1762 = vmatpush.bf16.msra.mxu0 %v1737
        %1763 = vmatpush.bf16.msra.mxu0 %v1735
        %1764 = vmatpush.bf16.msra.mxu0 %v1733
        %1765 = vmatpush.bf16.msra.mxu0 %v1731
        %1766 = vmatmul.bf16.gmra.mxu0 %v1756
        %v1767 = vpop.f32.mrf.mxu0
        %v1768 = vadd.f32 0.0, %v1767
        %v1769 = vpop.f32.mrf.mxu0
        %v1770 = vadd.f32 0.0, %v1769
        %1771 = vdwg.mxu0
        %1772 = vmatpush.bf16.msra.mxu0 0
        %1773 = vmatpush.bf16.msra.mxu0 0
        %1774 = vmatpush.bf16.msra.mxu0 %v1742
        %1775 = vmatpush.bf16.msra.mxu0 %v1740
        %1776 = vmatpush.bf16.msra.mxu0 %v1738
        %1777 = vmatpush.bf16.msra.mxu0 %v1736
        %1778 = vmatpush.bf16.msra.mxu0 %v1734
        %1779 = vmatpush.bf16.msra.mxu0 %v1732
        %1780 = vmatmul.bf16.gmra.mxu0 %v1756
        %v1781 = vpop.f32.mrf.mxu0
        %v1782 = vadd.f32 0.0, %v1781
        %v1783 = vpop.f32.mrf.mxu0
        %v1784 = vadd.f32 0.0, %v1783
        %1785 = vdwg.mxu0
        %v1786 = vadd.f32 %v1662, %v1768
        %v1787 = vadd.f32 %v1676, %v1782
        %v1788 = vadd.f32 %v1664, %v1770
        %v1789 = vadd.f32 %v1678, %v1784
        %s1790 = scalar_lea.vmem [#allocation2], 288
        %v1791 = vld [vmem:[%s1790] sm:$0xff]
        %v1792 = vld [vmem:[%s1790 + $0x8] sm:$0xff]
        %v1793 = vld [vmem:[%s1790 + $0x10] sm:$0xff]
        %v1794 = vld [vmem:[%s1790 + $0x18] sm:$0xff]
        %v1795 = vld [vmem:[%s1790 + $0x20] sm:$0xff]
        %v1796 = vld [vmem:[%s1790 + $0x28] sm:$0xff]
        %v1797 = vld [vmem:[%s1790 + $0x30] sm:$0xff]
        %v1798 = vld [vmem:[%s1790 + $0x38] sm:$0xff]
        %v1799 = vld [vmem:[%s1790 + $0x40] sm:$0xff]
        %v1800 = vld [vmem:[%s1790 + $0x48] sm:$0xff]
        %v1801 = vld [vmem:[%s1790 + $0x50] sm:$0xff]
        %v1802 = vld [vmem:[%s1790 + $0x58] sm:$0xff]
        %v1803 = vrot.slane %v1492, 1
        %v1804 = vrot.slane %v1494, 2
        %v1805 = vor.u32 %v1803, %v1804
        %v1818 = vunpack.c.l.b16 %v1791
        %v1819 = vunpack.c.h.b16 %v1791
        %v1820 = vunpack.c.l.b16 %v1792
        %v1821 = vunpack.c.h.b16 %v1792
        %v1822 = vunpack.c.l.b16 %v1793
        %v1823 = vunpack.c.h.b16 %v1793
        %v1824 = vunpack.c.l.b16 %v1794
        %v1825 = vunpack.c.h.b16 %v1794
        %v1826 = vunpack.c.l.b16 %v1795
        %v1827 = vunpack.c.h.b16 %v1795
        %v1828 = vunpack.c.l.b16 %v1796
        %v1829 = vunpack.c.h.b16 %v1796
        %v1830 = vunpack.c.l.b16 %v1797
        %v1831 = vunpack.c.h.b16 %v1797
        %v1832 = vunpack.c.l.b16 %v1798
        %v1833 = vunpack.c.h.b16 %v1798
        %v1834 = vunpack.c.l.b16 %v1799
        %v1835 = vunpack.c.h.b16 %v1799
        %v1836 = vunpack.c.l.b16 %v1800
        %v1837 = vunpack.c.h.b16 %v1800
        %v1838 = vunpack.c.l.b16 %v1801
        %v1839 = vunpack.c.h.b16 %v1801
        %v1840 = vunpack.c.l.b16 %v1802
        %v1841 = vunpack.c.h.b16 %v1802
        %v1842 = vpack.c.b16 %v1820, %v1818
        %v1843 = vpack.c.b16 %v1821, %v1819
        %v1844 = vpack.c.b16 %v1824, %v1822
        %v1845 = vpack.c.b16 %v1825, %v1823
        %v1846 = vpack.c.b16 %v1828, %v1826
        %v1847 = vpack.c.b16 %v1829, %v1827
        %v1848 = vpack.c.b16 %v1832, %v1830
        %v1849 = vpack.c.b16 %v1833, %v1831
        %v1850 = vpack.c.b16 %v1836, %v1834
        %v1851 = vpack.c.b16 %v1837, %v1835
        %v1852 = vpack.c.b16 %v1840, %v1838
        %v1853 = vpack.c.b16 %v1841, %v1839
        %v1867 = vsel %vm1558, %v1805, 0
        %1869 = vmatpush.bf16.msra.mxu0 0
        %1870 = vmatpush.bf16.msra.mxu0 0
        %1871 = vmatpush.bf16.msra.mxu0 %v1852
        %1872 = vmatpush.bf16.msra.mxu0 %v1850
        %1873 = vmatpush.bf16.msra.mxu0 %v1848
        %1874 = vmatpush.bf16.msra.mxu0 %v1846
        %1875 = vmatpush.bf16.msra.mxu0 %v1844
        %1876 = vmatpush.bf16.msra.mxu0 %v1842
        %1877 = vmatmul.bf16.gmra.mxu0 %v1867
        %v1878 = vpop.f32.mrf.mxu0
        %v1879 = vadd.f32 0.0, %v1878
        %v1880 = vpop.f32.mrf.mxu0
        %v1881 = vadd.f32 0.0, %v1880
        %1882 = vdwg.mxu0
        %1883 = vmatpush.bf16.msra.mxu0 0
        %1884 = vmatpush.bf16.msra.mxu0 0
        %1885 = vmatpush.bf16.msra.mxu0 %v1853
        %1886 = vmatpush.bf16.msra.mxu0 %v1851
        %1887 = vmatpush.bf16.msra.mxu0 %v1849
        %1888 = vmatpush.bf16.msra.mxu0 %v1847
        %1889 = vmatpush.bf16.msra.mxu0 %v1845
        %1890 = vmatpush.bf16.msra.mxu0 %v1843
        %1891 = vmatmul.bf16.gmra.mxu0 %v1867
        %v1892 = vpop.f32.mrf.mxu0
        %v1893 = vadd.f32 0.0, %v1892
        %v1894 = vpop.f32.mrf.mxu0
        %v1895 = vadd.f32 0.0, %v1894
        %1896 = vdwg.mxu0
        %v1897 = vadd.f32 %v1786, %v1879
        %v1898 = vadd.f32 %v1787, %v1893
        %v1899 = vadd.f32 %v1788, %v1881
        %v1900 = vadd.f32 %v1789, %v1895
        %s1901 = scalar_lea.vmem [#allocation2], 384
        %v1902 = vld [vmem:[%s1901] sm:$0xff]
        %v1903 = vld [vmem:[%s1901 + $0x8] sm:$0xff]
        %v1904 = vld [vmem:[%s1901 + $0x10] sm:$0xff]
        %v1905 = vld [vmem:[%s1901 + $0x18] sm:$0xff]
        %v1906 = vld [vmem:[%s1901 + $0x20] sm:$0xff]
        %v1907 = vld [vmem:[%s1901 + $0x28] sm:$0xff]
        %v1908 = vld [vmem:[%s1901 + $0x30] sm:$0xff]
        %v1909 = vld [vmem:[%s1901 + $0x38] sm:$0xff]
        %v1910 = vld [vmem:[%s1901 + $0x40] sm:$0xff]
        %v1911 = vld [vmem:[%s1901 + $0x48] sm:$0xff]
        %v1912 = vld [vmem:[%s1901 + $0x50] sm:$0xff]
        %v1913 = vld [vmem:[%s1901 + $0x58] sm:$0xff]
        %v1914 = vrot.slane %v1477, 2
        %v1927 = vunpack.c.l.b16 %v1902
        %v1928 = vunpack.c.h.b16 %v1902
        %v1929 = vunpack.c.l.b16 %v1903
        %v1930 = vunpack.c.h.b16 %v1903
        %v1931 = vunpack.c.l.b16 %v1904
        %v1932 = vunpack.c.h.b16 %v1904
        %v1933 = vunpack.c.l.b16 %v1905
        %v1934 = vunpack.c.h.b16 %v1905
        %v1935 = vunpack.c.l.b16 %v1906
        %v1936 = vunpack.c.h.b16 %v1906
        %v1937 = vunpack.c.l.b16 %v1907
        %v1938 = vunpack.c.h.b16 %v1907
        %v1939 = vunpack.c.l.b16 %v1908
        %v1940 = vunpack.c.h.b16 %v1908
        %v1941 = vunpack.c.l.b16 %v1909
        %v1942 = vunpack.c.h.b16 %v1909
        %v1943 = vunpack.c.l.b16 %v1910
        %v1944 = vunpack.c.h.b16 %v1910
        %v1945 = vunpack.c.l.b16 %v1911
        %v1946 = vunpack.c.h.b16 %v1911
        %v1947 = vunpack.c.l.b16 %v1912
        %v1948 = vunpack.c.h.b16 %v1912
        %v1949 = vunpack.c.l.b16 %v1913
        %v1950 = vunpack.c.h.b16 %v1913
        %v1951 = vpack.c.b16 %v1929, %v1927
        %v1952 = vpack.c.b16 %v1930, %v1928
        %v1953 = vpack.c.b16 %v1933, %v1931
        %v1954 = vpack.c.b16 %v1934, %v1932
        %v1955 = vpack.c.b16 %v1937, %v1935
        %v1956 = vpack.c.b16 %v1938, %v1936
        %v1957 = vpack.c.b16 %v1941, %v1939
        %v1958 = vpack.c.b16 %v1942, %v1940
        %v1959 = vpack.c.b16 %v1945, %v1943
        %v1960 = vpack.c.b16 %v1946, %v1944
        %v1961 = vpack.c.b16 %v1949, %v1947
        %v1962 = vpack.c.b16 %v1950, %v1948
        %v1976 = vsel %vm1558, %v1914, 0
        %1978 = vmatpush.bf16.msra.mxu0 0
        %1979 = vmatpush.bf16.msra.mxu0 0
        %1980 = vmatpush.bf16.msra.mxu0 %v1961
        %1981 = vmatpush.bf16.msra.mxu0 %v1959
        %1982 = vmatpush.bf16.msra.mxu0 %v1957
        %1983 = vmatpush.bf16.msra.mxu0 %v1955
        %1984 = vmatpush.bf16.msra.mxu0 %v1953
        %1985 = vmatpush.bf16.msra.mxu0 %v1951
        %1986 = vmatmul.bf16.gmra.mxu0 %v1976
        %v1987 = vpop.f32.mrf.mxu0
        %v1988 = vadd.f32 0.0, %v1987
        %v1989 = vpop.f32.mrf.mxu0
        %v1990 = vadd.f32 0.0, %v1989
        %1991 = vdwg.mxu0
        %1992 = vmatpush.bf16.msra.mxu0 0
        %1993 = vmatpush.bf16.msra.mxu0 0
        %1994 = vmatpush.bf16.msra.mxu0 %v1962
        %1995 = vmatpush.bf16.msra.mxu0 %v1960
        %1996 = vmatpush.bf16.msra.mxu0 %v1958
        %1997 = vmatpush.bf16.msra.mxu0 %v1956
        %1998 = vmatpush.bf16.msra.mxu0 %v1954
        %1999 = vmatpush.bf16.msra.mxu0 %v1952
        %2000 = vmatmul.bf16.gmra.mxu0 %v1976
        %v2001 = vpop.f32.mrf.mxu0
        %v2002 = vadd.f32 0.0, %v2001
        %v2003 = vpop.f32.mrf.mxu0
        %v2004 = vadd.f32 0.0, %v2003
        %2005 = vdwg.mxu0
        %v2006 = vadd.f32 %v1897, %v1988
        %v2007 = vadd.f32 %v1898, %v2002
        %v2008 = vadd.f32 %v1899, %v1990
        %v2009 = vadd.f32 %v1900, %v2004
        %v2010 = vld [vmem:[%s6] sm:$0x3]
        %v2012 = vperm.slane %v2010, 0
        %v2013 = vperm.slane %v2010, 1
        %v2016 = vadd.f32 %v2006, %v2012
        %v2017 = vadd.f32 %v2007, %v2013
        %v2018 = vadd.f32 %v2008, %v2012
        %v2019 = vadd.f32 %v2009, %v2013
        %v2020 = vmax.f32 %v2016, 0.0
        %v2021 = vmax.f32 %v2017, 0.0
        %v2022 = vmax.f32 %v2018, 0.0
        %v2023 = vmax.f32 %v2019, 0.0
        %2028 = vrot.lane.b32.xlu0 %v2020, 127
        %v2029 = vpop.permute.xlu0 %2028
        %2030 = vrot.lane.b32.xlu0 %v2021, 127
        %v2031 = vpop.permute.xlu0 %2030
        %2032 = vrot.lane.b32.xlu0 %v2022, 127
        %v2033 = vpop.permute.xlu0 %2032
        %2034 = vrot.lane.b32.xlu0 %v2023, 127
        %v2035 = vpop.permute.xlu0 %2034
        %v2036 = vsel %vm1130, %v2029, %v2031
        %v2037 = vsel %vm1130, %v2033, %v2035
        %v2042 = vmax.f32 %v2020, %v2036
        %v2043 = vmax.f32 %v2021, %v2031
        %v2044 = vmax.f32 %v2022, %v2037
        %v2045 = vmax.f32 %v2023, %v2035
        %2050 = vrot.lane.b32.xlu0 %v2042, 126
        %v2051 = vpop.permute.xlu0 %2050
        %2052 = vrot.lane.b32.xlu0 %v2043, 126
        %v2053 = vpop.permute.xlu0 %2052
        %2054 = vrot.lane.b32.xlu0 %v2044, 126
        %v2055 = vpop.permute.xlu0 %2054
        %2056 = vrot.lane.b32.xlu0 %v2045, 126
        %v2057 = vpop.permute.xlu0 %2056
        %v2058 = vsel %vm1186, %v2051, %v2053
        %v2059 = vsel %vm1186, %v2055, %v2057
        %v2064 = vmax.f32 %v2042, %v2058
        %v2065 = vmax.f32 %v2043, %v2053
        %v2066 = vmax.f32 %v2044, %v2059
        %v2067 = vmax.f32 %v2045, %v2057
        %v2068 = vld [vmem:[%s7] sm:$0xf]
        %v2069 = vld [vmem:[%s7 + $0x4] sm:$0xf]
        %v2070 = vld [vmem:[%s7 + $0x8] sm:$0xf]
        %v2071 = vld [vmem:[%s7 + $0xc] sm:$0xf]
        %v2072 = vld [vmem:[%s7 + $0x10] sm:$0xf]
        %v2073 = vld [vmem:[%s7 + $0x14] sm:$0xf]
        %v2074 = vld [vmem:[%s7 + $0x18] sm:$0xf]
        %v2075 = vld [vmem:[%s7 + $0x1c] sm:$0xf]
        %v2076 = vld [vmem:[%s7 + $0x20] sm:$0xf]
        %v2077 = vld [vmem:[%s7 + $0x24] sm:$0xf]
        %v2078 = vld [vmem:[%s7 + $0x28] sm:$0xf]
        %v2079 = vld [vmem:[%s7 + $0x2c] sm:$0xf]
        %v2080 = vld [vmem:[%s7 + $0x30] sm:$0xf]
        %v2081 = vld [vmem:[%s7 + $0x34] sm:$0xf]
        %v2082 = vld [vmem:[%s7 + $0x38] sm:$0xf]
        %v2083 = vld [vmem:[%s7 + $0x3c] sm:$0xf]
        %v2084 = vld [vmem:[%s7 + $0x40] sm:$0xf]
        %v2085 = vld [vmem:[%s7 + $0x44] sm:$0xf]
        %v2086 = vld [vmem:[%s7 + $0x48] sm:$0xf]
        %v2087 = vld [vmem:[%s7 + $0x4c] sm:$0xf]
        %v2088 = vld [vmem:[%s7 + $0x50] sm:$0xf]
        %v2089 = vld [vmem:[%s7 + $0x54] sm:$0xf]
        %v2090 = vld [vmem:[%s7 + $0x58] sm:$0xf]
        %v2091 = vld [vmem:[%s7 + $0x5c] sm:$0x7]
        %v2092 = vpack.c.bf16 %v2066, %v2064
        %v2093 = vpack.c.bf16 %v2067, %v2065
        %v2118 = vunpack.c.l.b16 %v2068
        %v2119 = vunpack.c.l.b16 %v2069
        %v2120 = vunpack.c.l.b16 %v2070
        %v2121 = vunpack.c.l.b16 %v2071
        %v2122 = vunpack.c.l.b16 %v2072
        %v2123 = vunpack.c.l.b16 %v2073
        %v2124 = vunpack.c.l.b16 %v2074
        %v2125 = vunpack.c.l.b16 %v2075
        %v2126 = vunpack.c.l.b16 %v2076
        %v2127 = vunpack.c.l.b16 %v2077
        %v2128 = vunpack.c.l.b16 %v2078
        %v2129 = vunpack.c.l.b16 %v2079
        %v2130 = vunpack.c.l.b16 %v2080
        %v2131 = vunpack.c.l.b16 %v2081
        %v2132 = vunpack.c.l.b16 %v2082
        %v2133 = vunpack.c.l.b16 %v2083
        %v2134 = vunpack.c.l.b16 %v2084
        %v2135 = vunpack.c.l.b16 %v2085
        %v2136 = vunpack.c.l.b16 %v2086
        %v2137 = vunpack.c.l.b16 %v2087
        %v2138 = vunpack.c.l.b16 %v2088
        %v2139 = vunpack.c.l.b16 %v2089
        %v2140 = vunpack.c.l.b16 %v2090
        %v2141 = vunpack.c.l.b16 %v2091
        %v2142 = vpack.c.b16 %v2119, %v2118
        %v2143 = vpack.c.b16 %v2121, %v2120
        %v2144 = vpack.c.b16 %v2123, %v2122
        %v2145 = vpack.c.b16 %v2125, %v2124
        %v2146 = vpack.c.b16 %v2127, %v2126
        %v2147 = vpack.c.b16 %v2129, %v2128
        %v2148 = vpack.c.b16 %v2131, %v2130
        %v2149 = vpack.c.b16 %v2133, %v2132
        %v2150 = vpack.c.b16 %v2135, %v2134
        %v2151 = vpack.c.b16 %v2137, %v2136
        %v2152 = vpack.c.b16 %v2139, %v2138
        %v2153 = vpack.c.b16 %v2141, %v2140
        %vm2165 = vcmask 498688
        %v2167 = vsel %vm2165, %v2093, 0
        %v2169 = vsel %vm1414, 4294967295, 65535
        %v2170 = vsel %vm1389, %v2169, 0
        %v2172 = vand.u32 %v2153, %v2170
        %2174 = vmatpush.bf16.msra.mxu0 %v2149
        %2175 = vmatpush.bf16.msra.mxu0 %v2148
        %2176 = vmatpush.bf16.msra.mxu0 %v2147
        %2177 = vmatpush.bf16.msra.mxu0 %v2146
        %2178 = vmatpush.bf16.msra.mxu0 %v2145
        %2179 = vmatpush.bf16.msra.mxu0 %v2144
        %2180 = vmatpush.bf16.msra.mxu0 %v2143
        %2181 = vmatpush.bf16.msra.mxu0 %v2142
        %2182 = vmatmul.bf16.gmra.mxu0 %v2092
        %v2183 = vpop.f32.mrf.mxu0
        %v2184 = vadd.f32 0.0, %v2183
        %v2185 = vpop.f32.mrf.mxu0
        %v2186 = vadd.f32 0.0, %v2185
        %2187 = vdwg.mxu0
        %2188 = vmatpush.bf16.msra.mxu0 0
        %2189 = vmatpush.bf16.msra.mxu0 0
        %2190 = vmatpush.bf16.msra.mxu0 0
        %2191 = vmatpush.bf16.msra.mxu0 0
        %2192 = vmatpush.bf16.msra.mxu0 %v2172
        %2193 = vmatpush.bf16.msra.mxu0 %v2152
        %2194 = vmatpush.bf16.msra.mxu0 %v2151
        %2195 = vmatpush.bf16.msra.mxu0 %v2150
        %2196 = vmatmul.bf16.gmra.mxu0 %v2167
        %v2197 = vpop.f32.mrf.mxu0
        %v2198 = vadd.f32 %v2184, %v2197
        %v2199 = vpop.f32.mrf.mxu0
        %v2200 = vadd.f32 %v2186, %v2199
        %2201 = vdwg.mxu0
        %v2204 = vrot.slane %v2198, 1
        %v2205 = vrot.slane %v2200, 1
        %v2206 = vsel %vm1389, %v2204, %v2205
        %v2209 = vmax.f32 %v2198, %v2206
        %v2210 = vmax.f32 %v2200, %v2205
        %v2213 = vrot.slane %v2209, 2
        %v2214 = vrot.slane %v2210, 2
        %v2215 = vsel %vm1414, %v2213, %v2214
        %v2218 = vmax.f32 %v2209, %v2215
        %v2219 = vmax.f32 %v2210, %v2214
        %v2220 = vld [vmem:[%s8] sm:$0x7]
        %v2221 = vpack.c.bf16 %v2219, %v2218
        %vm2222 = vcmask 72704
        %v2224 = vsel %vm2222, %v2220, 0
        %v2227 = vand.u32 %v2221, %v1334
        %2229 = vmatpush.bf16.msra.mxu0 0
        %2230 = vmatpush.bf16.msra.mxu0 0
        %2231 = vmatpush.bf16.msra.mxu0 0
        %2232 = vmatpush.bf16.msra.mxu0 0
        %2233 = vmatpush.bf16.msra.mxu0 0
        %2234 = vmatpush.bf16.msra.mxu0 0
        %2235 = vmatpush.bf16.msra.mxu0 0
        %2236 = vmatpush.bf16.msra.mxu0 %v2227
        %2237 = vmatmul.bf16.gmra.mxu0 %v2224
        %v2238 = vpop.f32.mrf.mxu0
        %v2239 = vadd.f32 0.0, %v2238
        %v2240 = vpop.f32.mrf.mxu0
        %2241 = vdwg.mxu0
        %v2242 = vld [vmem:[#allocation5] sm:$0xf]
        %v2243 = vld [vmem:[#allocation5 + $0x4] sm:$0xf]
        %v2244 = vld [vmem:[#allocation5 + $0x8] sm:$0xf]
        %v2245 = vld [vmem:[#allocation5 + $0xc] sm:$0xf]
        %v2246 = vld [vmem:[#allocation5 + $0x10] sm:$0xf]
        %v2247 = vld [vmem:[#allocation5 + $0x14] sm:$0xf]
        %v2248 = vld [vmem:[#allocation5 + $0x18] sm:$0xf]
        %v2249 = vld [vmem:[#allocation5 + $0x1c] sm:$0xf]
        %v2250 = vld [vmem:[#allocation5 + $0x20] sm:$0xf]
        %v2251 = vld [vmem:[#allocation5 + $0x24] sm:$0xf]
        %v2252 = vpack.c.bf16 %v2239, %v2239
        %s2253 = scalar_lea.vmem [#allocation5], 40
        %v2254 = vld [vmem:[%s2253] sm:$0xf]
        %v2255 = vld [vmem:[%s2253 + $0x4] sm:$0xf]
        %v2256 = vld [vmem:[%s2253 + $0x8] sm:$0xf]
        %v2257 = vld [vmem:[%s2253 + $0xc] sm:$0xf]
        %v2258 = vld [vmem:[%s2253 + $0x10] sm:$0xf]
        %v2259 = vld [vmem:[%s2253 + $0x14] sm:$0xf]
        %v2260 = vld [vmem:[%s2253 + $0x18] sm:$0xf]
        %v2261 = vld [vmem:[%s2253 + $0x1c] sm:$0xf]
        %v2262 = vld [vmem:[%s2253 + $0x20] sm:$0xf]
        %v2263 = vld [vmem:[%s2253 + $0x24] sm:$0xf]
        %v2265 = vshrl.u32 %v2252, 16
        %v2277 = vunpack.c.l.b16 %v2254
        %v2278 = vunpack.c.l.b16 %v2255
        %v2279 = vunpack.c.l.b16 %v2256
        %v2280 = vunpack.c.l.b16 %v2257
        %v2281 = vunpack.c.l.b16 %v2258
        %v2282 = vunpack.c.l.b16 %v2259
        %v2283 = vunpack.c.l.b16 %v2260
        %v2284 = vunpack.c.l.b16 %v2261
        %v2285 = vunpack.c.l.b16 %v2262
        %v2286 = vunpack.c.l.b16 %v2263
        %v2287 = vpack.c.b16 %v2278, %v2277
        %v2288 = vpack.c.b16 %v2280, %v2279
        %v2289 = vpack.c.b16 %v2282, %v2281
        %v2290 = vpack.c.b16 %v2284, %v2283
        %v2291 = vpack.c.b16 %v2286, %v2285
        %vm2297 = vcmask 654336
        %v2299 = vsel %vm2297, %v2265, 0
        %2301 = vmatpush.bf16.msra.mxu0 0
        %2302 = vmatpush.bf16.msra.mxu0 0
        %2303 = vmatpush.bf16.msra.mxu0 0
        %2304 = vmatpush.bf16.msra.mxu0 %v2291
        %2305 = vmatpush.bf16.msra.mxu0 %v2290
        %2306 = vmatpush.bf16.msra.mxu0 %v2289
        %2307 = vmatpush.bf16.msra.mxu0 %v2288
        %2308 = vmatpush.bf16.msra.mxu0 %v2287
        %2309 = vmatmul.bf16.gmra.mxu0 %v2299
        %v2310 = vpop.f32.mrf.mxu0
        %v2311 = vadd.f32 0.0, %v2310
        %v2312 = vpop.f32.mrf.mxu0
        %2313 = vdwg.mxu0
        %v2324 = vunpack.c.l.b16 %v2242
        %v2325 = vunpack.c.l.b16 %v2243
        %v2326 = vunpack.c.l.b16 %v2244
        %v2327 = vunpack.c.l.b16 %v2245
        %v2328 = vunpack.c.l.b16 %v2246
        %v2329 = vunpack.c.l.b16 %v2247
        %v2330 = vunpack.c.l.b16 %v2248
        %v2331 = vunpack.c.l.b16 %v2249
        %v2332 = vunpack.c.l.b16 %v2250
        %v2333 = vunpack.c.l.b16 %v2251
        %v2334 = vpack.c.b16 %v2325, %v2324
        %v2335 = vpack.c.b16 %v2327, %v2326
        %v2336 = vpack.c.b16 %v2329, %v2328
        %v2337 = vpack.c.b16 %v2331, %v2330
        %v2338 = vpack.c.b16 %v2333, %v2332
        %v2344 = vsel %vm2297, %v2252, 0
        %2346 = vmatpush.bf16.msra.mxu0 0
        %2347 = vmatpush.bf16.msra.mxu0 0
        %2348 = vmatpush.bf16.msra.mxu0 0
        %2349 = vmatpush.bf16.msra.mxu0 %v2338
        %2350 = vmatpush.bf16.msra.mxu0 %v2337
        %2351 = vmatpush.bf16.msra.mxu0 %v2336
        %2352 = vmatpush.bf16.msra.mxu0 %v2335
        %2353 = vmatpush.bf16.msra.mxu0 %v2334
        %2354 = vmatmul.bf16.gmra.mxu0 %v2344
        %v2355 = vpop.f32.mrf.mxu0
        %v2356 = vadd.f32 %v2311, %v2355
        %v2357 = vpop.f32.mrf.mxu0
        %2358 = vdwg.mxu0
        %s2359 = scalar_lea.vmem [#allocation5], 80
        %v2360 = vld [vmem:[%s2359] sm:$0xf]
        %v2361 = vld [vmem:[%s2359 + $0x4] sm:$0xf]
        %v2362 = vld [vmem:[%s2359 + $0x8] sm:$0xf]
        %v2363 = vld [vmem:[%s2359 + $0xc] sm:$0xf]
        %v2364 = vld [vmem:[%s2359 + $0x10] sm:$0xf]
        %v2365 = vld [vmem:[%s2359 + $0x14] sm:$0xf]
        %v2366 = vld [vmem:[%s2359 + $0x18] sm:$0xf]
        %v2367 = vld [vmem:[%s2359 + $0x1c] sm:$0xf]
        %v2368 = vld [vmem:[%s2359 + $0x20] sm:$0xf]
        %v2369 = vld [vmem:[%s2359 + $0x24] sm:$0xf]
        %v2371 = vrot.slane %v2252, 1
        %v2382 = vunpack.c.l.b16 %v2360
        %v2383 = vunpack.c.l.b16 %v2361
        %v2384 = vunpack.c.l.b16 %v2362
        %v2385 = vunpack.c.l.b16 %v2363
        %v2386 = vunpack.c.l.b16 %v2364
        %v2387 = vunpack.c.l.b16 %v2365
        %v2388 = vunpack.c.l.b16 %v2366
        %v2389 = vunpack.c.l.b16 %v2367
        %v2390 = vunpack.c.l.b16 %v2368
        %v2391 = vunpack.c.l.b16 %v2369
        %v2392 = vpack.c.b16 %v2383, %v2382
        %v2393 = vpack.c.b16 %v2385, %v2384
        %v2394 = vpack.c.b16 %v2387, %v2386
        %v2395 = vpack.c.b16 %v2389, %v2388
        %v2396 = vpack.c.b16 %v2391, %v2390
        %v2403 = vsel %vm2297, %v2371, 0
        %2405 = vmatpush.bf16.msra.mxu0 0
        %2406 = vmatpush.bf16.msra.mxu0 0
        %2407 = vmatpush.bf16.msra.mxu0 0
        %2408 = vmatpush.bf16.msra.mxu0 %v2396
        %2409 = vmatpush.bf16.msra.mxu0 %v2395
        %2410 = vmatpush.bf16.msra.mxu0 %v2394
        %2411 = vmatpush.bf16.msra.mxu0 %v2393
        %2412 = vmatpush.bf16.msra.mxu0 %v2392
        %2413 = vmatmul.bf16.gmra.mxu0 %v2403
        %v2414 = vpop.f32.mrf.mxu0
        %v2415 = vadd.f32 0.0, %v2414
        %v2416 = vpop.f32.mrf.mxu0
        %2417 = vdwg.mxu0
        %v2418 = vadd.f32 %v2356, %v2415
        %s2419 = scalar_lea.vmem [#allocation5], 120
        %v2420 = vld [vmem:[%s2419] sm:$0xf]
        %v2421 = vld [vmem:[%s2419 + $0x4] sm:$0xf]
        %v2422 = vld [vmem:[%s2419 + $0x8] sm:$0xf]
        %v2423 = vld [vmem:[%s2419 + $0xc] sm:$0xf]
        %v2424 = vld [vmem:[%s2419 + $0x10] sm:$0xf]
        %v2425 = vld [vmem:[%s2419 + $0x14] sm:$0xf]
        %v2426 = vld [vmem:[%s2419 + $0x18] sm:$0xf]
        %v2427 = vld [vmem:[%s2419 + $0x1c] sm:$0xf]
        %v2428 = vld [vmem:[%s2419 + $0x20] sm:$0xf]
        %v2429 = vld [vmem:[%s2419 + $0x24] sm:$0xf]
        %v2430 = vrot.slane %v2265, 1
        %v2441 = vunpack.c.l.b16 %v2420
        %v2442 = vunpack.c.l.b16 %v2421
        %v2443 = vunpack.c.l.b16 %v2422
        %v2444 = vunpack.c.l.b16 %v2423
        %v2445 = vunpack.c.l.b16 %v2424
        %v2446 = vunpack.c.l.b16 %v2425
        %v2447 = vunpack.c.l.b16 %v2426
        %v2448 = vunpack.c.l.b16 %v2427
        %v2449 = vunpack.c.l.b16 %v2428
        %v2450 = vunpack.c.l.b16 %v2429
        %v2451 = vpack.c.b16 %v2442, %v2441
        %v2452 = vpack.c.b16 %v2444, %v2443
        %v2453 = vpack.c.b16 %v2446, %v2445
        %v2454 = vpack.c.b16 %v2448, %v2447
        %v2455 = vpack.c.b16 %v2450, %v2449
        %v2462 = vsel %vm2297, %v2430, 0
        %2464 = vmatpush.bf16.msra.mxu0 0
        %2465 = vmatpush.bf16.msra.mxu0 0
        %2466 = vmatpush.bf16.msra.mxu0 0
        %2467 = vmatpush.bf16.msra.mxu0 %v2455
        %2468 = vmatpush.bf16.msra.mxu0 %v2454
        %2469 = vmatpush.bf16.msra.mxu0 %v2453
        %2470 = vmatpush.bf16.msra.mxu0 %v2452
        %2471 = vmatpush.bf16.msra.mxu0 %v2451
        %2472 = vmatmul.bf16.gmra.mxu0 %v2462
        %v2473 = vpop.f32.mrf.mxu0
        %v2474 = vadd.f32 0.0, %v2473
        %v2475 = vpop.f32.mrf.mxu0
        %2476 = vdwg.mxu0
        %v2477 = vadd.f32 %v2418, %v2474
        %s2478 = scalar_lea.vmem [#allocation5], 160
        %v2479 = vld [vmem:[%s2478] sm:$0xf]
        %v2480 = vld [vmem:[%s2478 + $0x4] sm:$0xf]
        %v2481 = vld [vmem:[%s2478 + $0x8] sm:$0xf]
        %v2482 = vld [vmem:[%s2478 + $0xc] sm:$0xf]
        %v2483 = vld [vmem:[%s2478 + $0x10] sm:$0xf]
        %v2484 = vld [vmem:[%s2478 + $0x14] sm:$0xf]
        %v2485 = vld [vmem:[%s2478 + $0x18] sm:$0xf]
        %v2486 = vld [vmem:[%s2478 + $0x1c] sm:$0xf]
        %v2487 = vld [vmem:[%s2478 + $0x20] sm:$0xf]
        %v2488 = vld [vmem:[%s2478 + $0x24] sm:$0xf]
        %v2489 = vrot.slane %v2252, 2
        %v2500 = vunpack.c.l.b16 %v2479
        %v2501 = vunpack.c.l.b16 %v2480
        %v2502 = vunpack.c.l.b16 %v2481
        %v2503 = vunpack.c.l.b16 %v2482
        %v2504 = vunpack.c.l.b16 %v2483
        %v2505 = vunpack.c.l.b16 %v2484
        %v2506 = vunpack.c.l.b16 %v2485
        %v2507 = vunpack.c.l.b16 %v2486
        %v2508 = vunpack.c.l.b16 %v2487
        %v2509 = vunpack.c.l.b16 %v2488
        %v2510 = vpack.c.b16 %v2501, %v2500
        %v2511 = vpack.c.b16 %v2503, %v2502
        %v2512 = vpack.c.b16 %v2505, %v2504
        %v2513 = vpack.c.b16 %v2507, %v2506
        %v2514 = vpack.c.b16 %v2509, %v2508
        %v2521 = vsel %vm2297, %v2489, 0
        %2523 = vmatpush.bf16.msra.mxu0 0
        %2524 = vmatpush.bf16.msra.mxu0 0
        %2525 = vmatpush.bf16.msra.mxu0 0
        %2526 = vmatpush.bf16.msra.mxu0 %v2514
        %2527 = vmatpush.bf16.msra.mxu0 %v2513
        %2528 = vmatpush.bf16.msra.mxu0 %v2512
        %2529 = vmatpush.bf16.msra.mxu0 %v2511
        %2530 = vmatpush.bf16.msra.mxu0 %v2510
        %2531 = vmatmul.bf16.gmra.mxu0 %v2521
        %v2532 = vpop.f32.mrf.mxu0
        %v2533 = vadd.f32 0.0, %v2532
        %v2534 = vpop.f32.mrf.mxu0
        %2535 = vdwg.mxu0
        %v2536 = vadd.f32 %v2477, %v2533
        %v2537 = vld [vmem:[%s10] sm:$0x1]
        %v2538 = vadd.f32 %v2536, %v2537
        %v2539 = vmax.f32 %v2538, 0.0
        %v2540 = vld [vmem:[%s11] sm:$0xf]
        %v2541 = vld [vmem:[%s11 + $0x4] sm:$0xf]
        %v2542 = vld [vmem:[%s11 + $0x8] sm:$0xf]
        %v2543 = vld [vmem:[%s11 + $0xc] sm:$0xf]
        %v2544 = vld [vmem:[%s11 + $0x10] sm:$0xf]
        %v2545 = vld [vmem:[%s11 + $0x14] sm:$0xf]
        %v2546 = vld [vmem:[%s11 + $0x18] sm:$0xf]
        %v2547 = vld [vmem:[%s11 + $0x1c] sm:$0xf]
        %v2548 = vld [vmem:[%s11 + $0x20] sm:$0xf]
        %v2549 = vld [vmem:[%s11 + $0x24] sm:$0xf]
        %v2550 = vld [vmem:[%s11 + $0x28] sm:$0xf]
        %v2551 = vld [vmem:[%s11 + $0x2c] sm:$0xf]
        %v2552 = vld [vmem:[%s11 + $0x30] sm:$0xf]
        %v2553 = vld [vmem:[%s11 + $0x34] sm:$0xf]
        %v2554 = vld [vmem:[%s11 + $0x38] sm:$0xf]
        %v2555 = vpack.c.bf16 %v2539, %v2539
        %v2556 = vld [vmem:[%s12] sm:$0x1]
        %v2572 = vunpack.c.l.b16 %v2540
        %v2573 = vunpack.c.l.b16 %v2541
        %v2574 = vunpack.c.l.b16 %v2542
        %v2575 = vunpack.c.l.b16 %v2543
        %v2576 = vunpack.c.l.b16 %v2544
        %v2577 = vunpack.c.l.b16 %v2545
        %v2578 = vunpack.c.l.b16 %v2546
        %v2579 = vunpack.c.l.b16 %v2547
        %v2580 = vunpack.c.l.b16 %v2548
        %v2581 = vunpack.c.l.b16 %v2549
        %v2582 = vunpack.c.l.b16 %v2550
        %v2583 = vunpack.c.l.b16 %v2551
        %v2584 = vunpack.c.l.b16 %v2552
        %v2585 = vunpack.c.l.b16 %v2553
        %v2586 = vunpack.c.l.b16 %v2554
        %v2587 = vpack.c.b16 %v2573, %v2572
        %v2588 = vpack.c.b16 %v2575, %v2574
        %v2589 = vpack.c.b16 %v2577, %v2576
        %v2590 = vpack.c.b16 %v2579, %v2578
        %v2591 = vpack.c.b16 %v2581, %v2580
        %v2592 = vpack.c.b16 %v2583, %v2582
        %v2593 = vpack.c.b16 %v2585, %v2584
        %v2594 = vpack.c.b16 %v2586, %v2586
        %vm2602 = vcmask 982016
        %v2604 = vsel %vm2602, %v2555, 0
        %v2607 = vsel %vm1331, %v2594, 0
        %2609 = vmatpush.bf16.msra.mxu0 %v2607
        %2610 = vmatpush.bf16.msra.mxu0 %v2593
        %2611 = vmatpush.bf16.msra.mxu0 %v2592
        %2612 = vmatpush.bf16.msra.mxu0 %v2591
        %2613 = vmatpush.bf16.msra.mxu0 %v2590
        %2614 = vmatpush.bf16.msra.mxu0 %v2589
        %2615 = vmatpush.bf16.msra.mxu0 %v2588
        %2616 = vmatpush.bf16.msra.mxu0 %v2587
        %2617 = vmatmul.bf16.gmra.mxu0 %v2604
        %v2618 = vpop.f32.mrf.mxu0
        %v2619 = vadd.f32 %v2556, %v2618
        %v2620 = vpop.f32.mrf.mxu0
        %2621 = vdwg.mxu0
        %v2622 = vmax.f32 %v2619, 0.0
        %v2623 = vld [vmem:[%s13] sm:$0xf]
        %v2624 = vld [vmem:[%s13 + $0x4] sm:$0xf]
        %v2625 = vld [vmem:[%s13 + $0x8] sm:$0xf]
        %v2626 = vld [vmem:[%s13 + $0xc] sm:$0xf]
        %v2627 = vld [vmem:[%s13 + $0x10] sm:$0xf]
        %v2628 = vld [vmem:[%s13 + $0x14] sm:$0xf]
        %v2629 = vld [vmem:[%s13 + $0x18] sm:$0xf]
        %v2630 = vld [vmem:[%s13 + $0x1c] sm:$0xf]
        %v2631 = vld [vmem:[%s13 + $0x20] sm:$0xf]
        %v2632 = vld [vmem:[%s13 + $0x24] sm:$0xf]
        %v2633 = vld [vmem:[%s13 + $0x28] sm:$0x3]
        %v2634 = vpack.c.bf16 %v2622, %v2622
        %v2635 = vld [vmem:[%s14] sm:$0x1]
        %v2647 = vunpack.c.l.b16 %v2623
        %v2648 = vunpack.c.l.b16 %v2624
        %v2649 = vunpack.c.l.b16 %v2625
        %v2650 = vunpack.c.l.b16 %v2626
        %v2651 = vunpack.c.l.b16 %v2627
        %v2652 = vunpack.c.l.b16 %v2628
        %v2653 = vunpack.c.l.b16 %v2629
        %v2654 = vunpack.c.l.b16 %v2630
        %v2655 = vunpack.c.l.b16 %v2631
        %v2656 = vunpack.c.l.b16 %v2632
        %v2657 = vunpack.c.l.b16 %v2633
        %v2658 = vpack.c.b16 %v2648, %v2647
        %v2659 = vpack.c.b16 %v2650, %v2649
        %v2660 = vpack.c.b16 %v2652, %v2651
        %v2661 = vpack.c.b16 %v2654, %v2653
        %v2662 = vpack.c.b16 %v2656, %v2655
        %v2663 = vpack.c.b16 %v2657, %v2657
        %vm2669 = vcmask 687104
        %v2671 = vsel %vm2669, %v2634, 0
        %vm2673 = vcmask 1041408
        %v2675 = vsel %vm2673, %v2663, 0
        %2677 = vmatpush.bf16.msra.mxu0 0
        %2678 = vmatpush.bf16.msra.mxu0 0
        %2679 = vmatpush.bf16.msra.mxu0 %v2675
        %2680 = vmatpush.bf16.msra.mxu0 %v2662
        %2681 = vmatpush.bf16.msra.mxu0 %v2661
        %2682 = vmatpush.bf16.msra.mxu0 %v2660
        %2683 = vmatpush.bf16.msra.mxu0 %v2659
        %2684 = vmatpush.bf16.msra.mxu0 %v2658
        %2685 = vmatmul.bf16.gmra.mxu0 %v2671
        %v2686 = vpop.f32.mrf.mxu0
        %v2687 = vadd.f32 %v2635, %v2686
        %v2688 = vpop.f32.mrf.mxu0
        %2689 = vdwg.mxu0
        %v2690 = vsub.f32 0.0, %v2687
        %v2691 = vmul.f32 %v2690, 1.442695
        %v2692 = vpow.pop %v2691
        %v2693 = vadd.f32 %v2692, 1.0
        %v2694 = vrcp.pop %v2693
        %vm2695 = vcmask 73728
        %2696 = vst.msk [vmem:[%s520] sm:$0x1] %vm2695, %v2694
        %s2697 = sand.u32 %s359, 1
        %s2698 = scalar_lea.sflag [#allocation4], %s2697
        %s2699 = sand.u32 %s359, 1
        %s2700 = scalar_lea.vmem [#allocation7], %s2699
        // Predicated region
        $region89: #{model_forward.1} parent=79 // pred_check
          %p2701 = pneg %p369
        $region90: #{model_forward.1} parent=79 // pred_check_branch
          %2703 = sbr.rel (%p2701) target = $region92
        $region91: #{model_forward.1} parent=79 // pred_region
          %2705 = vsyncadd %s2698, 0
          %s2706 = scalar_lea.hbm %s15, %s31
          %s2708 = sshll.u32 %s2700, 4
          %s2709 = int_to_ptr.vmem [resolvable:$true] %s2708
          %s2710 = sshll.u32 %s2706, 4
          %s2711 = int_to_ptr.hbm [resolvable:$true] %s2710
          %2713 = dma.vmem_to_hbm [thread:$0]  %s2709, 16, %s2711, %s2698
        $region92: #{model_forward.1} parent=79 // pred_fallthru
          _
      $region80: #{model_forward.1} parent=5 // pred_fallthru
        _
      %p2714 = scmp.le.s32.totalorder 2, %s26
      // Predicated region
      $region93: #{model_forward.1} parent=5 // pred_check
        %p2715 = pneg %p2714
      $region94: #{model_forward.1} parent=5 // pred_check_branch
        %2717 = sbr.rel (%p2715) target = $region96
      $region95: #{model_forward.1} parent=5 // pred_region
        %s2718 = ssub.s32 %s26, 2
        // Predicated region
        $region97: #{model_forward.1} parent=95 // pred_check
          %p2719 = pneg %p375
        $region98: #{model_forward.1} parent=95 // pred_check_branch
          %2721 = sbr.rel (%p2719) target = $region100
        $region99: #{model_forward.1} parent=95 // pred_region
          %s2722 = sand.u32 %s360, 1
          %s2723 = scalar_lea.sflag [#allocation4], %s2722
          %s2724 = sand.u32 %s360, 1
          %s2725 = scalar_lea.vmem [#allocation7], %s2724
          %2727 = dma.done %s2723, 16
        $region100: #{model_forward.1} parent=95 // pred_fallthru
          _
      $region96: #{model_forward.1} parent=5 // pred_fallthru
        _
    $region6: #{model_forward.1} parent=1 // loop_footer
      %s30 = sadd.s32 1, %s26
    $region7: #{model_forward.1} parent=1 // loop_footer_branch
      %25 = sbr.rel target = $region3
    $region8: #{model_forward.1} parent=1 // loop_exit
      _
    %2728 = vsyncpa [#allocation3], 1
    %s2729 = scalar_lea.sflag [#allocation3], 1
    %2730 = vsyncpa %s2729, 1
    %2731 = vsyncpa [#allocation6], 1
    %2732 = vsyncpa [#allocation4], 1
    %s2733 = scalar_lea.sflag [#allocation4], 1
    %2734 = vsyncpa %s2733, 1

</llo_original>
